<compile_context>
chip_gen: v5e
topology: v5e:2x2
jax: 0.10.0
libtpu: 0.0.40
codegen_flags: <defaults>
</compile_context>

<pallas_src>
import functools

import jax
import jax.numpy as jnp
from jax import lax
from jax.experimental import pallas as pl
from jax.experimental.pallas import tpu as pltpu


# ------------------------------ Pallas kernel -------------------------------


def _conv_bn_relu_kernel(x_ref, w_ref, mask_ref, gamma_ref, beta_ref, out_ref,
                         y_sc, stats_sc, coef_sc, *,
                         taps, wp, l_out, c_out, total_m, eps):
    """Grid = (pass, sample).  Pass 0: conv + batch stats.  Pass 1: folded BN + ReLU."""
    p = pl.program_id(0)   # 0: conv + stats, 1: BN + ReLU
    s = pl.program_id(1)   # sample (batch) index

    # ----------------------- pass 0: conv + batch statistics -----------------------
    @pl.when(p == 0)
    def _conv_and_stats():
        @pl.when(s == 0)
        def _init():
            stats_sc[...] = jnp.zeros_like(stats_sc)

        x = x_ref[0]                                    # (C_in, LEN_FLAT), loaded once
        y = jnp.zeros((c_out, l_out), jnp.float32)
        for t, (i, j) in enumerate(taps):               # static unroll over KH*KW taps
            off = i * wp + j                            # flat shift of tap (i, j)
            y += jnp.dot(w_ref[t], x[:, off:off + l_out],
                         preferred_element_type=jnp.float32)
        y = y * mask_ref[...]                           # zero the row-wrap (junk) lanes

        y_sc[s] = y                                     # keep Y resident in VMEM (no HBM trip)

        # Single RMW update of [sum; sumsq] per channel.
        # NOTE: E[y^2] - E[y]^2 in f32 is fine at these sizes; a centered second pass would be
        # needed for very large M.
        z = jnp.concatenate([y, y * y], axis=0)         # (2*C_out, L)
        stats_sc[...] += jnp.sum(z, axis=1, keepdims=True)

    # ----------------------- pass 1: folded BN + ReLU -------------------------------
    @pl.when(p == 1)
    def _bn_relu():
        @pl.when(s == 0)
        def _fold_bn_once():
            mean = stats_sc[0:c_out, :] / total_m
            var = stats_sc[c_out:2 * c_out, :] / total_m - mean * mean   # biased variance
            scale = gamma_ref[...] * lax.rsqrt(var + eps)
            shift = beta_ref[...] - mean * scale
            coef_sc[...] = jnp.concatenate([scale, shift], axis=0)

        y = y_sc[s]                                     # (C_out, L)
        scale = coef_sc[0:c_out, :]
        shift = coef_sc[c_out:2 * c_out, :]
        out_ref[0] = jnp.maximum(y * scale + shift, 0.0)


# ------------------------------- host wrapper --------------------------------


def conv_block_forward(x, weight, bias, gamma, beta, *, stride=1, padding=1, eps=1e-5):
    """ConvBlock forward: relu(batch_norm(conv2d(x))).  x is NCHW float32."""
    # Conv bias is cancelled exactly by training-mode BatchNorm's mean subtraction,
    # so it never enters the kernel (one less VPU add and one less input DMA).
    del bias

    if stride != 1:
        # TODO(synk): the flattened-shift conv formulation assumes stride=1; strided convs would
        # need an im2col fallback or subsampling of the stride-1 result.
        raise NotImplementedError("conv_block_forward currently supports stride=1 only")

    n, c_in, h, w = x.shape
    c_out, c_in_w, kh, kw = weight.shape
    assert c_in_w == c_in

    hp, wp = h + 2 * padding, w + 2 * padding
    h_out = hp - kh + 1
    w_out = wp - kw + 1
    l_out = h_out * wp                                  # flat output length (incl. wrap lanes)
    slice_end = (kh - 1) * wp + (kw - 1) + l_out        # furthest read into the flat image
    len_flat = ((max(slice_end, hp * wp) + 127) // 128) * 128   # lane-pad to a multiple of 128

    # Flatten the zero-padded image per (sample, channel).  Tap (i, j) of the conv is then a
    # contiguous lane-shift by i*wp + j, so no KH*KW-duplicated im2col buffer is materialized.
    xpad = jnp.pad(x, ((0, 0), (0, 0), (padding, padding), (padding, padding)))
    x_flat = xpad.reshape(n, c_in, hp * wp)
    x_flat = jnp.pad(x_flat, ((0, 0), (0, 0), (0, len_flat - hp * wp)))

    # Weight taps: tap t = (i, j) -> (C_out, C_in) matrix.
    w_taps = weight.transpose(2, 3, 0, 1).reshape(kh * kw, c_out, c_in)
    g_col = gamma.reshape(c_out, 1).astype(jnp.float32)
    b_col = beta.reshape(c_out, 1).astype(jnp.float32)

    # Flat positions that wrap across an image row are junk: mask them so they do not pollute
    # the batch statistics (they are cropped from the output on the host).
    pidx = jnp.arange(l_out, dtype=jnp.int32)
    mask = ((pidx % wp) < w_out).astype(jnp.float32).reshape(1, l_out)

    taps = tuple((i, j) for i in range(kh) for j in range(kw))
    total_m = float(n * h_out * w_out)

    kernel = functools.partial(
        _conv_bn_relu_kernel, taps=taps, wp=wp, l_out=l_out, c_out=c_out,
        total_m=total_m, eps=float(eps))

    # TODO(synk): the Y-resident VMEM scratch assumes the whole conv output fits in VMEM (true at
    # these shapes); for large N*H*W split into two pallas_calls (conv+stats, then BN+ReLU with
    # input_output_aliases) and tile the spatial axis.
    out_flat = pl.pallas_call(
        kernel,
        out_shape=jax.ShapeDtypeStruct((n, c_out, l_out), jnp.float32),
        grid_spec=pltpu.PrefetchScalarGridSpec(
            num_scalar_prefetch=0,
            grid=(2, n),   # (pass, sample); pass 0 = conv + stats, pass 1 = BN + ReLU
            in_specs=[
                # x: fetch sample b during pass 0; park on sample 0 during pass 1 (unused).
                pl.BlockSpec((1, c_in, len_flat), lambda p, b: ((1 - p) * b, 0, 0)),
                pl.BlockSpec((kh * kw, c_out, c_in), lambda p, b: (0, 0, 0)),
                pl.BlockSpec((1, l_out), lambda p, b: (0, 0)),
                pl.BlockSpec((c_out, 1), lambda p, b: (0, 0)),
                pl.BlockSpec((c_out, 1), lambda p, b: (0, 0)),
            ],
            # Output blocks are only written in pass 1; park on block 0 during pass 0 so no
            # uninitialized buffer is ever flushed to HBM.
            out_specs=pl.BlockSpec((1, c_out, l_out), lambda p, b: (p * b, 0, 0)),
            scratch_shapes=[
                pltpu.VMEM((n, c_out, l_out), jnp.float32),   # Y, resident across both passes
                pltpu.VMEM((2 * c_out, 1), jnp.float32),      # [sum; sumsq] per channel
                pltpu.VMEM((2 * c_out, 1), jnp.float32),      # folded BN [scale; shift]
            ],
        ),
        # TODO(synk): both grid axes carry the batch-stats dependency, so this runs on one
        # TensorCore; on v7x split samples across cores with per-core partial stats + combine.
        compiler_params=pltpu.CompilerParams(
            dimension_semantics=("arbitrary", "arbitrary")),
    )(x_flat, w_taps, mask, g_col, b_col)

    # (N, C_out, H_out*W_pad) -> drop the wrap columns -> NCHW directly (no transpose needed).
    return out_flat.reshape(n, c_out, h_out, wp)[:, :, :, :w_out]


# -------------------------------- reference ----------------------------------


def ref_forward(x, weight, bias, gamma, beta, *, stride=1, padding=1, eps=1e-5):
    y = lax.conv_general_dilated(
        x, weight, (stride, stride), ((padding, padding), (padding, padding)),
        dimension_numbers=("NCHW", "OIHW", "NCHW"),
    ) + bias.reshape(1, -1, 1, 1)
    mean = y.mean(axis=(0, 2, 3), keepdims=True)
    var = y.var(axis=(0, 2, 3), keepdims=True)  # biased (ddof=0): BN training-mode semantics
    yn = (y - mean) / jnp.sqrt(var + eps)
    return jnp.maximum(gamma.reshape(1, -1, 1, 1) * yn + beta.reshape(1, -1, 1, 1), 0.0)


# ----------------------------------- main -------------------------------------


if __name__ == "__main__":
    key = jax.random.PRNGKey(0)
    k_x, k_w, k_b, k_g, k_bt = jax.random.split(key, 5)

    # ConvBlock(in_channels=4, out_channels=8, kernel_size=3, stride=1, padding=1)
    N, C_IN, H, W = 2, 4, 16, 16
    C_OUT, KH, KW = 8, 3, 3

    x = jax.random.normal(k_x, (N, C_IN, H, W), dtype=jnp.float32)
    weight = 0.1 * jax.random.normal(k_w, (C_OUT, C_IN, KH, KW), dtype=jnp.float32)
    bias = 0.1 * jax.random.normal(k_b, (C_OUT,), dtype=jnp.float32)
    gamma = 1.0 + 0.1 * jax.random.normal(k_g, (C_OUT,), dtype=jnp.float32)
    beta = 0.1 * jax.random.normal(k_bt, (C_OUT,), dtype=jnp.float32)

    out = conv_block_forward(x, weight, bias, gamma, beta, stride=1, padding=1)
    out = jax.block_until_ready(out)

    expected = ref_forward(x, weight, bias, gamma, beta, stride=1, padding=1)
    assert out.shape == (N, C_OUT, H, W), out.shape
    err = float(jnp.max(jnp.abs(out - expected)))
    assert jnp.allclose(out, expected, rtol=1e-4, atol=1e-4), err

    print("KERNEL_OK")
</pallas_src>

<mosaic_0001>
module attributes {stable_mosaic.version = 11 : i64} {
  func.func @_conv_bn_relu_kernel(%arg0: i32, %arg1: i32, %arg2: memref<1x4x384xf32, #tpu.memory_space<vmem>>, %arg3: memref<9x8x4xf32, #tpu.memory_space<vmem>>, %arg4: memref<1x288xf32, #tpu.memory_space<vmem>>, %arg5: memref<8x1xf32, #tpu.memory_space<vmem>>, %arg6: memref<8x1xf32, #tpu.memory_space<vmem>>, %arg7: memref<1x8x288xf32, #tpu.memory_space<vmem>>, %arg8: memref<2x8x288xf32, #tpu.memory_space<vmem>>, %arg9: memref<16x1xf32, #tpu.memory_space<vmem>>, %arg10: memref<16x1xf32, #tpu.memory_space<vmem>>) attributes {dimension_semantics = [#tpu.dimension_semantics<arbitrary>, #tpu.dimension_semantics<arbitrary>], iteration_bounds = array<i64: 2, 2>, scalar_prefetch = 0 : i64, scratch_operands = 3 : i64, tpu.core_type = #tpu.core_type<tc>, window_params = [{transform_indices = @transform_0, window_bounds = array<i64: 1, 4, 384>}, {pipeline_mode = #tpu.pipeline_mode<synchronous>, transform_indices = @transform_1, window_bounds = array<i64: 9, 8, 4>}, {pipeline_mode = #tpu.pipeline_mode<synchronous>, transform_indices = @transform_2, window_bounds = array<i64: 1, 288>}, {pipeline_mode = #tpu.pipeline_mode<synchronous>, transform_indices = @transform_3, window_bounds = array<i64: 8, 1>}, {pipeline_mode = #tpu.pipeline_mode<synchronous>, transform_indices = @transform_4, window_bounds = array<i64: 8, 1>}, {transform_indices = @transform_5, window_bounds = array<i64: 1, 8, 288>}]} {
    %c0_i32 = arith.constant 0 : i32
    %0 = arith.cmpi eq, %arg0, %c0_i32 : i32
    %1 = arith.extui %0 : i1 to i32
    %c0_i32_0 = arith.constant 0 : i32
    %2 = arith.cmpi ne, %1, %c0_i32_0 : i32
    scf.if %2 {
      %c0_i32_2 = arith.constant 0 : i32
      %6 = arith.cmpi eq, %arg1, %c0_i32_2 : i32
      %7 = arith.extui %6 : i1 to i32
      %c0_i32_3 = arith.constant 0 : i32
      %8 = arith.cmpi ne, %7, %c0_i32_3 : i32
      scf.if %8 {
        %cst_43 = arith.constant 0.000000e+00 : f32
        %71 = vector.broadcast %cst_43 : f32 to vector<16x1xf32>
        %c0_44 = arith.constant 0 : index
        %c0_45 = arith.constant 0 : index
        %72 = vector.load %arg9[%c0_44, %c0_45] : memref<16x1xf32, #tpu.memory_space<vmem>>, vector<16x1xf32>
        tpu.vector_store %arg9[%c0_44, %c0_45], %71 {strides = array<i32>} : memref<16x1xf32, #tpu.memory_space<vmem>>, vector<16x1xf32>,
      } else {
      }
      %c0 = arith.constant 0 : index
      %c0_4 = arith.constant 0 : index
      %c0_5 = arith.constant 0 : index
      %9 = vector.load %arg2[%c0, %c0_4, %c0_5] : memref<1x4x384xf32, #tpu.memory_space<vmem>>, vector<1x4x384xf32>
      %10 = vector.shape_cast %9 : vector<1x4x384xf32> to vector<4x384xf32>
      %cst = arith.constant 0.000000e+00 : f32
      %11 = vector.broadcast %cst : f32 to vector<8x288xf32>
      %c0_6 = arith.constant 0 : index
      %c0_7 = arith.constant 0 : index
      %c0_8 = arith.constant 0 : index
      %12 = vector.load %arg3[%c0_6, %c0_7, %c0_8] : memref<9x8x4xf32, #tpu.memory_space<vmem>>, vector<1x8x4xf32>
      %13 = vector.shape_cast %12 : vector<1x8x4xf32> to vector<8x4xf32>
      %14 = vector.extract_strided_slice %10 {offsets = [0, 0], sizes = [4, 288], strides = [1, 1]} : vector<4x384xf32> to vector<4x288xf32>
      %cst_9 = arith.constant dense<0.000000e+00> : vector<8x288xf32>
      %15 = tpu.matmul %13, %14, %cst_9 {dimension_numbers = #tpu.dot_dimension_numbers<[1], [0], [0], [1], [0, 0, 1, 1], [], []>} : vector<8x4xf32>, vector<4x288xf32>, vector<8x288xf32> -> vector<8x288xf32>
      %16 = arith.addf %11, %15 : vector<8x288xf32>
      %c1 = arith.constant 1 : index
      %c0_10 = arith.constant 0 : index
      %c0_11 = arith.constant 0 : index
      %17 = vector.load %arg3[%c1, %c0_10, %c0_11] : memref<9x8x4xf32, #tpu.memory_space<vmem>>, vector<1x8x4xf32>
      %18 = vector.shape_cast %17 : vector<1x8x4xf32> to vector<8x4xf32>
      %19 = vector.extract_strided_slice %10 {offsets = [0, 1], sizes = [4, 288], strides = [1, 1]} : vector<4x384xf32> to vector<4x288xf32>
      %cst_12 = arith.constant dense<0.000000e+00> : vector<8x288xf32>
      %20 = tpu.matmul %18, %19, %cst_12 {dimension_numbers = #tpu.dot_dimension_numbers<[1], [0], [0], [1], [0, 0, 1, 1], [], []>} : vector<8x4xf32>, vector<4x288xf32>, vector<8x288xf32> -> vector<8x288xf32>
      %21 = arith.addf %16, %20 : vector<8x288xf32>
      %c2 = arith.constant 2 : index
      %c0_13 = arith.constant 0 : index
      %c0_14 = arith.constant 0 : index
      %22 = vector.load %arg3[%c2, %c0_13, %c0_14] : memref<9x8x4xf32, #tpu.memory_space<vmem>>, vector<1x8x4xf32>
      %23 = vector.shape_cast %22 : vector<1x8x4xf32> to vector<8x4xf32>
      %24 = vector.extract_strided_slice %10 {offsets = [0, 2], sizes = [4, 288], strides = [1, 1]} : vector<4x384xf32> to vector<4x288xf32>
      %cst_15 = arith.constant dense<0.000000e+00> : vector<8x288xf32>
      %25 = tpu.matmul %23, %24, %cst_15 {dimension_numbers = #tpu.dot_dimension_numbers<[1], [0], [0], [1], [0, 0, 1, 1], [], []>} : vector<8x4xf32>, vector<4x288xf32>, vector<8x288xf32> -> vector<8x288xf32>
      %26 = arith.addf %21, %25 : vector<8x288xf32>
      %c3 = arith.constant 3 : index
      %c0_16 = arith.constant 0 : index
      %c0_17 = arith.constant 0 : index
      %27 = vector.load %arg3[%c3, %c0_16, %c0_17] : memref<9x8x4xf32, #tpu.memory_space<vmem>>, vector<1x8x4xf32>
      %28 = vector.shape_cast %27 : vector<1x8x4xf32> to vector<8x4xf32>
      %29 = vector.extract_strided_slice %10 {offsets = [0, 18], sizes = [4, 288], strides = [1, 1]} : vector<4x384xf32> to vector<4x288xf32>
      %cst_18 = arith.constant dense<0.000000e+00> : vector<8x288xf32>
      %30 = tpu.matmul %28, %29, %cst_18 {dimension_numbers = #tpu.dot_dimension_numbers<[1], [0], [0], [1], [0, 0, 1, 1], [], []>} : vector<8x4xf32>, vector<4x288xf32>, vector<8x288xf32> -> vector<8x288xf32>
      %31 = arith.addf %26, %30 : vector<8x288xf32>
      %c4 = arith.constant 4 : index
      %c0_19 = arith.constant 0 : index
      %c0_20 = arith.constant 0 : index
      %32 = vector.load %arg3[%c4, %c0_19, %c0_20] : memref<9x8x4xf32, #tpu.memory_space<vmem>>, vector<1x8x4xf32>
      %33 = vector.shape_cast %32 : vector<1x8x4xf32> to vector<8x4xf32>
      %34 = vector.extract_strided_slice %10 {offsets = [0, 19], sizes = [4, 288], strides = [1, 1]} : vector<4x384xf32> to vector<4x288xf32>
      %cst_21 = arith.constant dense<0.000000e+00> : vector<8x288xf32>
      %35 = tpu.matmul %33, %34, %cst_21 {dimension_numbers = #tpu.dot_dimension_numbers<[1], [0], [0], [1], [0, 0, 1, 1], [], []>} : vector<8x4xf32>, vector<4x288xf32>, vector<8x288xf32> -> vector<8x288xf32>
      %36 = arith.addf %31, %35 : vector<8x288xf32>
      %c5 = arith.constant 5 : index
      %c0_22 = arith.constant 0 : index
      %c0_23 = arith.constant 0 : index
      %37 = vector.load %arg3[%c5, %c0_22, %c0_23] : memref<9x8x4xf32, #tpu.memory_space<vmem>>, vector<1x8x4xf32>
      %38 = vector.shape_cast %37 : vector<1x8x4xf32> to vector<8x4xf32>
      %39 = vector.extract_strided_slice %10 {offsets = [0, 20], sizes = [4, 288], strides = [1, 1]} : vector<4x384xf32> to vector<4x288xf32>
      %cst_24 = arith.constant dense<0.000000e+00> : vector<8x288xf32>
      %40 = tpu.matmul %38, %39, %cst_24 {dimension_numbers = #tpu.dot_dimension_numbers<[1], [0], [0], [1], [0, 0, 1, 1], [], []>} : vector<8x4xf32>, vector<4x288xf32>, vector<8x288xf32> -> vector<8x288xf32>
      %41 = arith.addf %36, %40 : vector<8x288xf32>
      %c6 = arith.constant 6 : index
      %c0_25 = arith.constant 0 : index
      %c0_26 = arith.constant 0 : index
      %42 = vector.load %arg3[%c6, %c0_25, %c0_26] : memref<9x8x4xf32, #tpu.memory_space<vmem>>, vector<1x8x4xf32>
      %43 = vector.shape_cast %42 : vector<1x8x4xf32> to vector<8x4xf32>
      %44 = vector.extract_strided_slice %10 {offsets = [0, 36], sizes = [4, 288], strides = [1, 1]} : vector<4x384xf32> to vector<4x288xf32>
      %cst_27 = arith.constant dense<0.000000e+00> : vector<8x288xf32>
      %45 = tpu.matmul %43, %44, %cst_27 {dimension_numbers = #tpu.dot_dimension_numbers<[1], [0], [0], [1], [0, 0, 1, 1], [], []>} : vector<8x4xf32>, vector<4x288xf32>, vector<8x288xf32> -> vector<8x288xf32>
      %46 = arith.addf %41, %45 : vector<8x288xf32>
      %c7 = arith.constant 7 : index
      %c0_28 = arith.constant 0 : index
      %c0_29 = arith.constant 0 : index
      %47 = vector.load %arg3[%c7, %c0_28, %c0_29] : memref<9x8x4xf32, #tpu.memory_space<vmem>>, vector<1x8x4xf32>
      %48 = vector.shape_cast %47 : vector<1x8x4xf32> to vector<8x4xf32>
      %49 = vector.extract_strided_slice %10 {offsets = [0, 37], sizes = [4, 288], strides = [1, 1]} : vector<4x384xf32> to vector<4x288xf32>
      %cst_30 = arith.constant dense<0.000000e+00> : vector<8x288xf32>
      %50 = tpu.matmul %48, %49, %cst_30 {dimension_numbers = #tpu.dot_dimension_numbers<[1], [0], [0], [1], [0, 0, 1, 1], [], []>} : vector<8x4xf32>, vector<4x288xf32>, vector<8x288xf32> -> vector<8x288xf32>
      %51 = arith.addf %46, %50 : vector<8x288xf32>
      %c8 = arith.constant 8 : index
      %c0_31 = arith.constant 0 : index
      %c0_32 = arith.constant 0 : index
      %52 = vector.load %arg3[%c8, %c0_31, %c0_32] : memref<9x8x4xf32, #tpu.memory_space<vmem>>, vector<1x8x4xf32>
      %53 = vector.shape_cast %52 : vector<1x8x4xf32> to vector<8x4xf32>
      %54 = vector.extract_strided_slice %10 {offsets = [0, 38], sizes = [4, 288], strides = [1, 1]} : vector<4x384xf32> to vector<4x288xf32>
      %cst_33 = arith.constant dense<0.000000e+00> : vector<8x288xf32>
      %55 = tpu.matmul %53, %54, %cst_33 {dimension_numbers = #tpu.dot_dimension_numbers<[1], [0], [0], [1], [0, 0, 1, 1], [], []>} : vector<8x4xf32>, vector<4x288xf32>, vector<8x288xf32> -> vector<8x288xf32>
      %56 = arith.addf %51, %55 : vector<8x288xf32>
      %c0_34 = arith.constant 0 : index
      %c0_35 = arith.constant 0 : index
      %57 = vector.load %arg4[%c0_34, %c0_35] : memref<1x288xf32, #tpu.memory_space<vmem>>, vector<1x288xf32>
      %58 = vector.broadcast %57 : vector<1x288xf32> to vector<8x288xf32>
      %59 = arith.mulf %56, %58 : vector<8x288xf32>
      %60 = arith.index_cast %arg1 : i32 to index
      %c0_36 = arith.constant 0 : index
      %c0_37 = arith.constant 0 : index
      %61 = vector.load %arg8[%60, %c0_36, %c0_37] : memref<2x8x288xf32, #tpu.memory_space<vmem>>, vector<1x8x288xf32>
      %62 = vector.shape_cast %61 : vector<1x8x288xf32> to vector<8x288xf32>
      %63 = vector.shape_cast %59 : vector<8x288xf32> to vector<1x8x288xf32>
      tpu.vector_store %arg8[%60, %c0_36, %c0_37], %63 {strides = array<i32>} : memref<2x8x288xf32, #tpu.memory_space<vmem>>, vector<1x8x288xf32>,
      %64 = arith.mulf %59, %59 : vector<8x288xf32>
      %65 = tpu.concatenate %59, %64 in 0 : vector<8x288xf32>, vector<8x288xf32> -> vector<16x288xf32>
      %c0_38 = arith.constant 0 : index
      %c0_39 = arith.constant 0 : index
      %66 = vector.load %arg9[%c0_38, %c0_39] : memref<16x1xf32, #tpu.memory_space<vmem>>, vector<16x1xf32>
      %cst_40 = arith.constant dense<0.000000e+00> : vector<16xf32>
      %67 = vector.multi_reduction <add>, %65, %cst_40 [1] : vector<16x288xf32> to vector<16xf32>
      %68 = vector.shape_cast %67 : vector<16xf32> to vector<16x1xf32>
      %69 = arith.addf %66, %68 : vector<16x1xf32>
      %c0_41 = arith.constant 0 : index
      %c0_42 = arith.constant 0 : index
      %70 = vector.load %arg9[%c0_41, %c0_42] : memref<16x1xf32, #tpu.memory_space<vmem>>, vector<16x1xf32>
      tpu.vector_store %arg9[%c0_41, %c0_42], %69 {strides = array<i32>} : memref<16x1xf32, #tpu.memory_space<vmem>>, vector<16x1xf32>,
    } else {
    }
    %c1_i32 = arith.constant 1 : i32
    %3 = arith.cmpi eq, %arg0, %c1_i32 : i32
    %4 = arith.extui %3 : i1 to i32
    %c0_i32_1 = arith.constant 0 : i32
    %5 = arith.cmpi ne, %4, %c0_i32_1 : i32
    scf.if %5 {
      %c0_i32_2 = arith.constant 0 : i32
      %6 = arith.cmpi eq, %arg1, %c0_i32_2 : i32
      %7 = arith.extui %6 : i1 to i32
      %c0_i32_3 = arith.constant 0 : i32
      %8 = arith.cmpi ne, %7, %c0_i32_3 : i32
      scf.if %8 {
        %c0_11 = arith.constant 0 : index
        %c0_12 = arith.constant 0 : index
        %23 = vector.load %arg9[%c0_11, %c0_12] : memref<16x1xf32, #tpu.memory_space<vmem>>, vector<8x1xf32>
        %cst_13 = arith.constant 5.120000e+02 : f32
        %24 = vector.broadcast %cst_13 : f32 to vector<8x1xf32>
        %25 = arith.divf %23, %24 : vector<8x1xf32>
        %c8_14 = arith.constant 8 : index
        %c0_15 = arith.constant 0 : index
        %26 = vector.load %arg9[%c8_14, %c0_15] : memref<16x1xf32, #tpu.memory_space<vmem>>, vector<8x1xf32>
        %cst_16 = arith.constant 5.120000e+02 : f32
        %27 = vector.broadcast %cst_16 : f32 to vector<8x1xf32>
        %28 = arith.divf %26, %27 : vector<8x1xf32>
        %29 = arith.mulf %25, %25 : vector<8x1xf32>
        %30 = arith.subf %28, %29 : vector<8x1xf32>
        %c0_17 = arith.constant 0 : index
        %c0_18 = arith.constant 0 : index
        %31 = vector.load %arg5[%c0_17, %c0_18] : memref<8x1xf32, #tpu.memory_space<vmem>>, vector<8x1xf32>
        %cst_19 = arith.constant 9.99999974E-6 : f32
        %32 = vector.broadcast %cst_19 : f32 to vector<8x1xf32>
        %33 = arith.addf %30, %32 : vector<8x1xf32>
        %34 = math.rsqrt %33 : vector<8x1xf32>
        %35 = arith.mulf %31, %34 : vector<8x1xf32>
        %c0_20 = arith.constant 0 : index
        %c0_21 = arith.constant 0 : index
        %36 = vector.load %arg6[%c0_20, %c0_21] : memref<8x1xf32, #tpu.memory_space<vmem>>, vector<8x1xf32>
        %37 = arith.mulf %25, %35 : vector<8x1xf32>
        %38 = arith.subf %36, %37 : vector<8x1xf32>
        %39 = tpu.concatenate %35, %38 in 0 : vector<8x1xf32>, vector<8x1xf32> -> vector<16x1xf32>
        %c0_22 = arith.constant 0 : index
        %c0_23 = arith.constant 0 : index
        %40 = vector.load %arg10[%c0_22, %c0_23] : memref<16x1xf32, #tpu.memory_space<vmem>>, vector<16x1xf32>
        tpu.vector_store %arg10[%c0_22, %c0_23], %39 {strides = array<i32>} : memref<16x1xf32, #tpu.memory_space<vmem>>, vector<16x1xf32>,
      } else {
      }
      %9 = arith.index_cast %arg1 : i32 to index
      %c0 = arith.constant 0 : index
      %c0_4 = arith.constant 0 : index
      %10 = vector.load %arg8[%9, %c0, %c0_4] : memref<2x8x288xf32, #tpu.memory_space<vmem>>, vector<1x8x288xf32>
      %11 = vector.shape_cast %10 : vector<1x8x288xf32> to vector<8x288xf32>
      %c0_5 = arith.constant 0 : index
      %c0_6 = arith.constant 0 : index
      %12 = vector.load %arg10[%c0_5, %c0_6] : memref<16x1xf32, #tpu.memory_space<vmem>>, vector<8x1xf32>
      %c8 = arith.constant 8 : index
      %c0_7 = arith.constant 0 : index
      %13 = vector.load %arg10[%c8, %c0_7] : memref<16x1xf32, #tpu.memory_space<vmem>>, vector<8x1xf32>
      %14 = vector.broadcast %12 : vector<8x1xf32> to vector<8x288xf32>
      %15 = arith.mulf %11, %14 : vector<8x288xf32>
      %16 = vector.broadcast %13 : vector<8x1xf32> to vector<8x288xf32>
      %17 = arith.addf %15, %16 : vector<8x288xf32>
      %cst = arith.constant 0.000000e+00 : f32
      %18 = vector.broadcast %cst : f32 to vector<8x288xf32>
      %19 = arith.maximumf %17, %18 : vector<8x288xf32>
      %c0_8 = arith.constant 0 : index
      %c0_9 = arith.constant 0 : index
      %c0_10 = arith.constant 0 : index
      %20 = vector.load %arg7[%c0_8, %c0_9, %c0_10] : memref<1x8x288xf32, #tpu.memory_space<vmem>>, vector<1x8x288xf32>
      %21 = vector.shape_cast %20 : vector<1x8x288xf32> to vector<8x288xf32>
      %22 = vector.shape_cast %19 : vector<8x288xf32> to vector<1x8x288xf32>
      tpu.vector_store %arg7[%c0_8, %c0_9, %c0_10], %22 {strides = array<i32>} : memref<1x8x288xf32, #tpu.memory_space<vmem>>, vector<1x8x288xf32>,
    } else {
    }
    return
  }
  func.func @transform_0(%arg0: i32, %arg1: i32) -> (i32, i32, i32) {
    %c1_i32 = arith.constant 1 : i32
    %0 = arith.subi %c1_i32, %arg0 : i32
    %1 = arith.muli %0, %arg1 : i32
    %c0_i32 = arith.constant 0 : i32
    %c0_i32_0 = arith.constant 0 : i32
    %c0_i32_1 = arith.constant 0 : i32
    return %1, %c0_i32, %c0_i32_0 : i32, i32, i32
  }
  func.func @transform_1(%arg0: i32, %arg1: i32) -> (i32, i32, i32) {
    %c0_i32 = arith.constant 0 : i32
    %c0_i32_0 = arith.constant 0 : i32
    %c0_i32_1 = arith.constant 0 : i32
    %c0_i32_2 = arith.constant 0 : i32
    return %c0_i32, %c0_i32_0, %c0_i32_1 : i32, i32, i32
  }
  func.func @transform_2(%arg0: i32, %arg1: i32) -> (i32, i32) {
    %c0_i32 = arith.constant 0 : i32
    %c0_i32_0 = arith.constant 0 : i32
    %c0_i32_1 = arith.constant 0 : i32
    return %c0_i32, %c0_i32_0 : i32, i32
  }
  func.func @transform_3(%arg0: i32, %arg1: i32) -> (i32, i32) {
    %c0_i32 = arith.constant 0 : i32
    %c0_i32_0 = arith.constant 0 : i32
    %c0_i32_1 = arith.constant 0 : i32
    return %c0_i32, %c0_i32_0 : i32, i32
  }
  func.func @transform_4(%arg0: i32, %arg1: i32) -> (i32, i32) {
    %c0_i32 = arith.constant 0 : i32
    %c0_i32_0 = arith.constant 0 : i32
    %c0_i32_1 = arith.constant 0 : i32
    return %c0_i32, %c0_i32_0 : i32, i32
  }
  func.func @transform_5(%arg0: i32, %arg1: i32) -> (i32, i32, i32) {
    %0 = arith.muli %arg0, %arg1 : i32
    %c0_i32 = arith.constant 0 : i32
    %c0_i32_0 = arith.constant 0 : i32
    %c0_i32_1 = arith.constant 0 : i32
    return %0, %c0_i32, %c0_i32_0 : i32, i32, i32
  }
}

</mosaic_0001>

<llo_original>
// kernel: tpu_custom_call.1
$region0: #{tpu_custom_call.1}
  #allocation0 [shape = 'u32[]', space=smem, size = 0x4, offset = 0x4, fixed_abs, tag = 'smem constant byte address 0x4 - core index']
  #allocation1 [shape = 'u32[72,128]{1,0:T(1,128)}', space=vmem, size = 0x9000, scoped, tag = 'internal scratch']
  #allocation2 [shape = 'f32[2,8,288]{2,1,0:T(8,128)}', space=vmem, size = 0x6000, scoped, tag = 'scratch operand']
  #allocation3 [shape = 'f32[16,1]{1,0:T(8,128)}', space=vmem, size = 0x2000, scoped, tag = 'scratch operand']
  #allocation4 [shape = 'f32[16,1]{1,0:T(8,128)}', space=vmem, size = 0x2000, scoped, tag = 'scratch operand']
  %s0 = inlined_call_operand.vmem [shape: f32[2,4,384], index: 0, kind: input, shape index: {}]
  %s1 = inlined_call_operand.vmem [shape: f32[9,8,4], index: 1, kind: input, shape index: {}]
  %s2 = inlined_call_operand.vmem [shape: f32[1,288], index: 2, kind: input, shape index: {}]
  %s3 = inlined_call_operand.vmem [shape: f32[8,1], index: 3, kind: input, shape index: {}]
  %s4 = inlined_call_operand.vmem [shape: f32[8,1], index: 4, kind: input, shape index: {}]
  %s5 = inlined_call_operand.hbm [shape: f32[2,8,288], index: 5, kind: output, shape index: {}]
  %s6 = sld [smem:[#allocation0]]
  $region69: #{tpu_custom_call.1} parent=0
    _
  %s8 = ssub.s32 1, %s6
  %s9 = scalar_select 0, %s8, %s6
  $region1: #{tpu_custom_call.1} parent=0
    #allocation5 [shape = 'u8[24576]{0}', space=vmem, size = 0x6000, scoped, tag = 'output window, operand 0']
    #allocation6 [shape = 's32[2]{0}', space=sflag, size = 0x8, scoped, tag = 'scoped memory for tpu_custom_call.1']
    %10 = vsyncpa [#allocation6], 0
    %s11 = scalar_lea.sflag [#allocation6], 1
    %12 = vsyncpa %s11, 0
    loop: start=0, step=1, limit=6
    $region2: #{tpu_custom_call.1} parent=1 // loop_pre_header
      _
    $region3: #{tpu_custom_call.1} parent=1 // loop_header
      %s14 = sphi 0, %s18
      %p15 = scmp.ge.s32.totalorder %s14, 6
      %s21 = sphi 0, %s33
      %s22 = sphi 0, %s29
      %s23 = sphi 0, %s21
      %s24 = sphi 0, %s22
      %s25 = sphi 0, %s23
      %s26 = sphi 0, %s24
      %s40 = sphi 0, %s42
      %s43 = sphi 0, %s40
      %s44 = sphi 0, %s43
      %s60 = sphi 0, %s44
      %s64 = sphi 0, %s64
      %s66 = sphi 0, %s64
      %s67 = sphi 0, %s66
      %s81 = sphi 0, %s67
      %s85 = sphi 0, %s85
      %s87 = sphi 0, %s85
      %s88 = sphi 0, %s87
      %s102 = sphi 0, %s88
      %s106 = sphi 0, %s106
      %s108 = sphi 0, %s106
      %s109 = sphi 0, %s108
      %s123 = sphi 0, %s109
      %s127 = sphi 0, %s127
      %s129 = sphi 0, %s127
      %s130 = sphi 0, %s129
      %s144 = sphi 0, %s130
      %s152 = sphi 0, %s154
      %s155 = sphi 0, %s152
      %s156 = sphi 0, %s155
      %s172 = sphi 0, %s156
    $region4: #{tpu_custom_call.1} parent=1 // loop_header_branch
      %17 = sbr.rel (%p15) target = $region8
    $region5: #{tpu_custom_call.1} parent=1 // loop_body
      %s19 = ssub.s32 %s14, 1
      %s20 = ssub.s32 %s14, 2
      %s27 = sadd.s32 1, %s22
      %p28 = scmp.ge.s32.totalorder %s27, 2
      %s29 = scalar_select %p28, 0, %s27
      %s30 = sadd.s32 1, %s21
      %s31 = scalar_select %p28, %s30, %s21
      %p32 = scmp.ge.s32.totalorder %s31, 2
      %s33 = scalar_select %p32, 0, %s31
      %s34 = ssub.s32 1, %s21
      %s35 = smul.u32 %s34, %s22
      %s36 = ssub.s32 1, %s33
      %s37 = smul.u32 %s36, %s29
      %s38 = ssub.s32 %s35, %s37
      %p39 = scmp.eq.s32.totalorder %s38, 0
      %s41 = sadd.s32 %s40, 1
      %s42 = scalar_select %p39, %s40, %s41
      %p45 = pneg %p39
      %p46 = scmp.eq.s32.totalorder %s14, 3
      %p47 = por %p45, %p46
      %p48 = scmp.ne.s32.totalorder %s40, %s43
      %p49 = scmp.eq.s32.totalorder %s14, 0
      %p50 = por %p48, %p49
      %p51 = scmp.ne.s32.totalorder %s40, %s43
      %p52 = scmp.eq.s32.totalorder %s19, 3
      %p53 = por %p51, %p52
      %p54 = scmp.ne.s32.totalorder %s43, %s44
      %p55 = scmp.eq.s32.totalorder %s19, 0
      %p56 = por %p54, %p55
      %p57 = scmp.ne.s32.totalorder %s43, %s44
      %p58 = scmp.eq.s32.totalorder %s20, 3
      %p59 = por %p57, %p58
      %p61 = scmp.ne.s32.totalorder %s44, %s60
      %p62 = scmp.eq.s32.totalorder %s20, 0
      %p63 = por %p61, %p62
      %s65 = sadd.s32 %s64, 1
      %p68 = scmp.eq.s32.totalorder %s14, 3
      %p69 = scmp.ne.s32.totalorder %s64, %s66
      %p70 = scmp.eq.s32.totalorder %s14, 0
      %p71 = por %p69, %p70
      %p72 = scmp.ne.s32.totalorder %s64, %s66
      %p73 = scmp.eq.s32.totalorder %s19, 3
      %p74 = por %p72, %p73
      %p75 = scmp.ne.s32.totalorder %s66, %s67
      %p76 = scmp.eq.s32.totalorder %s19, 0
      %p77 = por %p75, %p76
      %p78 = scmp.ne.s32.totalorder %s66, %s67
      %p79 = scmp.eq.s32.totalorder %s20, 3
      %p80 = por %p78, %p79
      %p82 = scmp.ne.s32.totalorder %s67, %s81
      %p83 = scmp.eq.s32.totalorder %s20, 0
      %p84 = por %p82, %p83
      %s86 = sadd.s32 %s85, 1
      %p89 = scmp.eq.s32.totalorder %s14, 3
      %p90 = scmp.ne.s32.totalorder %s85, %s87
      %p91 = scmp.eq.s32.totalorder %s14, 0
      %p92 = por %p90, %p91
      %p93 = scmp.ne.s32.totalorder %s85, %s87
      %p94 = scmp.eq.s32.totalorder %s19, 3
      %p95 = por %p93, %p94
      %p96 = scmp.ne.s32.totalorder %s87, %s88
      %p97 = scmp.eq.s32.totalorder %s19, 0
      %p98 = por %p96, %p97
      %p99 = scmp.ne.s32.totalorder %s87, %s88
      %p100 = scmp.eq.s32.totalorder %s20, 3
      %p101 = por %p99, %p100
      %p103 = scmp.ne.s32.totalorder %s88, %s102
      %p104 = scmp.eq.s32.totalorder %s20, 0
      %p105 = por %p103, %p104
      %s107 = sadd.s32 %s106, 1
      %p110 = scmp.eq.s32.totalorder %s14, 3
      %p111 = scmp.ne.s32.totalorder %s106, %s108
      %p112 = scmp.eq.s32.totalorder %s14, 0
      %p113 = por %p111, %p112
      %p114 = scmp.ne.s32.totalorder %s106, %s108
      %p115 = scmp.eq.s32.totalorder %s19, 3
      %p116 = por %p114, %p115
      %p117 = scmp.ne.s32.totalorder %s108, %s109
      %p118 = scmp.eq.s32.totalorder %s19, 0
      %p119 = por %p117, %p118
      %p120 = scmp.ne.s32.totalorder %s108, %s109
      %p121 = scmp.eq.s32.totalorder %s20, 3
      %p122 = por %p120, %p121
      %p124 = scmp.ne.s32.totalorder %s109, %s123
      %p125 = scmp.eq.s32.totalorder %s20, 0
      %p126 = por %p124, %p125
      %s128 = sadd.s32 %s127, 1
      %p131 = scmp.eq.s32.totalorder %s14, 3
      %p132 = scmp.ne.s32.totalorder %s127, %s129
      %p133 = scmp.eq.s32.totalorder %s14, 0
      %p134 = por %p132, %p133
      %p135 = scmp.ne.s32.totalorder %s127, %s129
      %p136 = scmp.eq.s32.totalorder %s19, 3
      %p137 = por %p135, %p136
      %p138 = scmp.ne.s32.totalorder %s129, %s130
      %p139 = scmp.eq.s32.totalorder %s19, 0
      %p140 = por %p138, %p139
      %p141 = scmp.ne.s32.totalorder %s129, %s130
      %p142 = scmp.eq.s32.totalorder %s20, 3
      %p143 = por %p141, %p142
      %p145 = scmp.ne.s32.totalorder %s130, %s144
      %p146 = scmp.eq.s32.totalorder %s20, 0
      %p147 = por %p145, %p146
      %s148 = smul.u32 %s21, %s22
      %s149 = smul.u32 %s33, %s29
      %s150 = ssub.s32 %s148, %s149
      %p151 = scmp.eq.s32.totalorder %s150, 0
      %s153 = sadd.s32 %s152, 1
      %s154 = scalar_select %p151, %s152, %s153
      %p157 = pneg %p151
      %p158 = scmp.eq.s32.totalorder %s14, 3
      %p159 = por %p157, %p158
      %p160 = scmp.ne.s32.totalorder %s152, %s155
      %p161 = scmp.eq.s32.totalorder %s14, 0
      %p162 = por %p160, %p161
      %p163 = scmp.ne.s32.totalorder %s152, %s155
      %p164 = scmp.eq.s32.totalorder %s19, 3
      %p165 = por %p163, %p164
      %p166 = scmp.ne.s32.totalorder %s155, %s156
      %p167 = scmp.eq.s32.totalorder %s19, 0
      %p168 = por %p166, %p167
      %p169 = scmp.ne.s32.totalorder %s155, %s156
      %p170 = scmp.eq.s32.totalorder %s20, 3
      %p171 = por %p169, %p170
      %p173 = scmp.ne.s32.totalorder %s156, %s172
      %p174 = scmp.eq.s32.totalorder %s20, 0
      %p175 = por %p173, %p174
      %p176 = scmp.le.s32.totalorder 1, %s14
      %p177 = scmp.lt.s32.totalorder %s14, 5
      %p178 = pnand %p176, %p177
      %p179 = pneg %p178
      // Predicated region
      $region9: #{tpu_custom_call.1} parent=5 // pred_check
        _
      $region10: #{tpu_custom_call.1} parent=5 // pred_check_branch
        %181 = sbr.rel (%p178) target = $region12
      $region11: #{tpu_custom_call.1} parent=5 // pred_region
        %s182 = ssub.s32 %s14, 1
        // Predicated region
        $region13: #{tpu_custom_call.1} parent=11 // pred_check
          %p183 = pneg %p77
        $region14: #{tpu_custom_call.1} parent=11 // pred_check_branch
          %185 = sbr.rel (%p183) target = $region16
        $region15: #{tpu_custom_call.1} parent=11 // pred_region
          _
        $region16: #{tpu_custom_call.1} parent=11 // pred_fallthru
          _
        // Predicated region
        $region17: #{tpu_custom_call.1} parent=11 // pred_check
          %p186 = pneg %p98
        $region18: #{tpu_custom_call.1} parent=11 // pred_check_branch
          %188 = sbr.rel (%p186) target = $region20
        $region19: #{tpu_custom_call.1} parent=11 // pred_region
          _
        $region20: #{tpu_custom_call.1} parent=11 // pred_fallthru
          _
        // Predicated region
        $region21: #{tpu_custom_call.1} parent=11 // pred_check
          %p189 = pneg %p119
        $region22: #{tpu_custom_call.1} parent=11 // pred_check_branch
          %191 = sbr.rel (%p189) target = $region24
        $region23: #{tpu_custom_call.1} parent=11 // pred_region
          _
        $region24: #{tpu_custom_call.1} parent=11 // pred_fallthru
          _
        // Predicated region
        $region25: #{tpu_custom_call.1} parent=11 // pred_check
          %p192 = pneg %p140
        $region26: #{tpu_custom_call.1} parent=11 // pred_check_branch
          %194 = sbr.rel (%p192) target = $region28
        $region27: #{tpu_custom_call.1} parent=11 // pred_region
          _
        $region28: #{tpu_custom_call.1} parent=11 // pred_fallthru
          _
      $region12: #{tpu_custom_call.1} parent=5 // pred_fallthru
        _
      %p195 = scmp.lt.s32.totalorder %s14, 4
      // Predicated region
      $region29: #{tpu_custom_call.1} parent=5 // pred_check
        %p196 = pneg %p195
      $region30: #{tpu_custom_call.1} parent=5 // pred_check_branch
        %198 = sbr.rel (%p196) target = $region32
      $region31: #{tpu_custom_call.1} parent=5 // pred_region
        // Predicated region
        $region33: #{tpu_custom_call.1} parent=31 // pred_check
          %p199 = pneg %p50
        $region34: #{tpu_custom_call.1} parent=31 // pred_check_branch
          %201 = sbr.rel (%p199) target = $region36
        $region35: #{tpu_custom_call.1} parent=31 // pred_region
          %s202 = ssub.s32 1, %s21
          %s203 = smul.u32 %s202, %s22
          %p204 = scmp.lt.s32.totalorder %s203, 1
          %s205 = scalar_select %p204, %s203, 1
          %s206 = smul.addr %s205, 3
          %s207 = smul.addr %s206, 4
          %s208 = scalar_lea.vmem %s0, %s207
          %s209 = ssub.s32 1, %s21
          %s210 = smul.u32 %s209, %s22
        $region36: #{tpu_custom_call.1} parent=31 // pred_fallthru
          _
      $region32: #{tpu_custom_call.1} parent=5 // pred_fallthru
        _
      %p211 = scmp.le.s32.totalorder 1, %s14
      %p212 = scmp.lt.s32.totalorder %s14, 5
      %p213 = pnand %p211, %p212
      %p214 = pneg %p213
      // Predicated region
      $region37: #{tpu_custom_call.1} parent=5 // pred_check
        _
      $region38: #{tpu_custom_call.1} parent=5 // pred_check_branch
        %216 = sbr.rel (%p213) target = $region40
      $region39: #{tpu_custom_call.1} parent=5 // pred_region
        %s217 = ssub.s32 %s14, 1
        %s218 = ssub.s32 1, %s23
        %s219 = smul.u32 %s218, %s24
        %p220 = scmp.lt.s32.totalorder %s219, 1
        %s221 = scalar_select %p220, %s219, 1
        %s222 = smul.addr %s221, 3
        %s223 = smul.addr %s222, 4
        %s224 = scalar_lea.vmem %s0, %s223
        %p225 = pneg %p56
        %p226 = pneg %p53
        %p227 = pneg %p77
        %p228 = pneg %p74
        %p229 = pneg %p98
        %p230 = pneg %p95
        %p231 = pneg %p119
        %p232 = pneg %p116
        %p233 = pneg %p140
        %p234 = pneg %p137
        %p235 = pneg %p168
        %p236 = pneg %p165
        %s237 = sand.u32 %s155, 1
        %s238 = scalar_lea.sflag [#allocation6], %s237
        %s239 = sand.u32 %s155, 1
        %s240 = smul.addr %s239, 24
        %s241 = scalar_lea.vmem [#allocation5], %s240
        %s242 = ssub.s32 1, %s23
        %s243 = smul.u32 %s242, %s24
        %p244 = scmp.lt.s32.totalorder %s243, 1
        %s245 = scalar_select %p244, %s243, 1
        %s246 = smul.addr %s245, 3
        %s247 = smul.addr %s246, 4
        %s248 = scalar_lea.vmem %s0, %s247
        %s249 = ssub.s32 1, %s23
        %s250 = smul.u32 %s249, %s24
        %s251 = smul.u32 %s23, %s24
        %p252 = scmp.eq.s32.totalorder %s23, 0
        // Predicated region
        $region41: #{tpu_custom_call.1} parent=39 // pred_check
          %p253 = pneg %p252
        $region42: #{tpu_custom_call.1} parent=39 // pred_check_branch
          %255 = sbr.rel (%p253) target = $region44
        $region43: #{tpu_custom_call.1} parent=39 // pred_region
          %p256 = scmp.eq.s32.totalorder %s24, 0
          // Predicated region
          $region45: #{tpu_custom_call.1} parent=43 // pred_check
            %p257 = pneg %p256
          $region46: #{tpu_custom_call.1} parent=43 // pred_check_branch
            %259 = sbr.rel (%p257) target = $region48
          $region47: #{tpu_custom_call.1} parent=43 // pred_region
            %vm260 = vcmask 7168
            %261 = vst.msk [vmem:[#allocation3] sm:$0xff] %vm260, 0.0
            %262 = vst.msk [vmem:[#allocation3 + $0x8] sm:$0xff] %vm260, 0.0
          $region48: #{tpu_custom_call.1} parent=43 // pred_fallthru
            _
          %v263 = vld [vmem:[%s248] sm:$0xff]
          %v264 = vld [vmem:[%s248 + $0x8] sm:$0xf]
          %v265 = vld [vmem:[%s1] sm:$0xff]
          %s266 = scalar_lea.vmem %s1, 8
          %v267 = vld [vmem:[%s266] sm:$0xff]
          %270 = vst [vmem:[#allocation1] ss:$2 sm:$0xff] %v263
          %s271 = scalar_lea.vmem [#allocation1], 16
          %272 = vst [vmem:[%s271] ss:$2 sm:$0xff] %v264
          %v273 = vld.sshfl [vmem:[#allocation1] sm:$0xff pattern:$0x75316420]
          %v274 = vld.sshfl [vmem:[#allocation1 + $0x8] sm:$0xff pattern:$0x75316420]
          %v275 = vld.sshfl [vmem:[#allocation1 + $0x10] sm:$0xff pattern:$0x75316420]
          %276 = vrot.lane.b32.xlu0 %v273, 127
          %v277 = vpop.permute.xlu0 %276
          %278 = vrot.lane.b32.xlu0 %v274, 127
          %v279 = vpop.permute.xlu0 %278
          %280 = vrot.lane.b32.xlu0 %v275, 127
          %v281 = vpop.permute.xlu0 %280
          %vm282 = vcmask 1039360
          %v283 = vsel %vm282, %v277, %v279
          %v284 = vsel %vm282, %v279, %v281
          %vm285 = vcmask 31744
          %v287 = vsel %vm285, %v267, 0
          %vm289 = vcmask 1043456
          %v290 = vsel %vm289, %v283, 0
          %v292 = vsel %vm289, %v284, 0
          %v294 = vsel %vm289, %v281, 0
          %296 = vmatpush.msra.mxu0 0.0
          %297 = vmatpush.msra.mxu0 0.0
          %298 = vmatpush.msra.mxu0 0.0
          %299 = vmatpush.msra.mxu0 0.0
          %300 = vmatpush.msra.mxu0 0.0
          %301 = vmatpush.msra.mxu0 0.0
          %302 = vmatpush.msra.mxu0 0.0
          %303 = vmatpush.msra.mxu0 0.0
          %304 = vmatpush.msra.mxu0 0.0
          %305 = vmatpush.msra.mxu0 0.0
          %306 = vmatpush.msra.mxu0 0.0
          %307 = vmatpush.msra.mxu0 0.0
          %308 = vmatpush.msra.mxu0 0.0
          %309 = vmatpush.msra.mxu0 0.0
          %310 = vmatpush.msra.mxu0 0.0
          %311 = vmatpush.msra.mxu0 %v290
          %312 = vmatmul.f32.gmra.mxu0 %v287
          %v313 = vpop.f32.mrf.mxu0
          %v314 = vadd.f32 0.0, %v313
          %315 = vdwg.mxu0
          %316 = vmatpush.msra.mxu0 0.0
          %317 = vmatpush.msra.mxu0 0.0
          %318 = vmatpush.msra.mxu0 0.0
          %319 = vmatpush.msra.mxu0 0.0
          %320 = vmatpush.msra.mxu0 0.0
          %321 = vmatpush.msra.mxu0 0.0
          %322 = vmatpush.msra.mxu0 0.0
          %323 = vmatpush.msra.mxu0 0.0
          %324 = vmatpush.msra.mxu0 0.0
          %325 = vmatpush.msra.mxu0 0.0
          %326 = vmatpush.msra.mxu0 0.0
          %327 = vmatpush.msra.mxu0 0.0
          %328 = vmatpush.msra.mxu0 0.0
          %329 = vmatpush.msra.mxu0 0.0
          %330 = vmatpush.msra.mxu0 0.0
          %331 = vmatpush.msra.mxu0 %v292
          %332 = vmatmul.f32.gmra.mxu0 %v287
          %v333 = vpop.f32.mrf.mxu0
          %v334 = vadd.f32 0.0, %v333
          %335 = vdwg.mxu0
          %336 = vmatpush.msra.mxu0 0.0
          %337 = vmatpush.msra.mxu0 0.0
          %338 = vmatpush.msra.mxu0 0.0
          %339 = vmatpush.msra.mxu0 0.0
          %340 = vmatpush.msra.mxu0 0.0
          %341 = vmatpush.msra.mxu0 0.0
          %342 = vmatpush.msra.mxu0 0.0
          %343 = vmatpush.msra.mxu0 0.0
          %344 = vmatpush.msra.mxu0 0.0
          %345 = vmatpush.msra.mxu0 0.0
          %346 = vmatpush.msra.mxu0 0.0
          %347 = vmatpush.msra.mxu0 0.0
          %348 = vmatpush.msra.mxu0 0.0
          %349 = vmatpush.msra.mxu0 0.0
          %350 = vmatpush.msra.mxu0 0.0
          %351 = vmatpush.msra.mxu0 %v294
          %352 = vmatmul.f32.gmra.mxu0 %v287
          %v353 = vpop.f32.mrf.mxu0
          %v354 = vadd.f32 0.0, %v353
          %355 = vdwg.mxu0
          %356 = vst [vmem:[#allocation1] ss:$2 sm:$0xff] %v263
          %s357 = scalar_lea.vmem [#allocation1], 16
          %358 = vst [vmem:[%s357] ss:$2 sm:$0xff] %v264
          %v359 = vld.sshfl [vmem:[#allocation1] sm:$0xff pattern:$0x75316420]
          %v360 = vld.sshfl [vmem:[#allocation1 + $0x8] sm:$0xff pattern:$0x75316420]
          %v361 = vld.sshfl [vmem:[#allocation1 + $0x10] sm:$0xff pattern:$0x75316420]
          %v363 = vsel %vm285, %v265, 0
          %v365 = vsel %vm289, %v359, 0
          %v367 = vsel %vm289, %v360, 0
          %v369 = vsel %vm289, %v361, 0
          %371 = vmatpush.msra.mxu0 0.0
          %372 = vmatpush.msra.mxu0 0.0
          %373 = vmatpush.msra.mxu0 0.0
          %374 = vmatpush.msra.mxu0 0.0
          %375 = vmatpush.msra.mxu0 0.0
          %376 = vmatpush.msra.mxu0 0.0
          %377 = vmatpush.msra.mxu0 0.0
          %378 = vmatpush.msra.mxu0 0.0
          %379 = vmatpush.msra.mxu0 0.0
          %380 = vmatpush.msra.mxu0 0.0
          %381 = vmatpush.msra.mxu0 0.0
          %382 = vmatpush.msra.mxu0 0.0
          %383 = vmatpush.msra.mxu0 0.0
          %384 = vmatpush.msra.mxu0 0.0
          %385 = vmatpush.msra.mxu0 0.0
          %386 = vmatpush.msra.mxu0 %v365
          %387 = vmatmul.f32.gmra.mxu0 %v363
          %v388 = vpop.f32.mrf.mxu0
          %v389 = vadd.f32 %v314, %v388
          %390 = vdwg.mxu0
          %391 = vmatpush.msra.mxu0 0.0
          %392 = vmatpush.msra.mxu0 0.0
          %393 = vmatpush.msra.mxu0 0.0
          %394 = vmatpush.msra.mxu0 0.0
          %395 = vmatpush.msra.mxu0 0.0
          %396 = vmatpush.msra.mxu0 0.0
          %397 = vmatpush.msra.mxu0 0.0
          %398 = vmatpush.msra.mxu0 0.0
          %399 = vmatpush.msra.mxu0 0.0
          %400 = vmatpush.msra.mxu0 0.0
          %401 = vmatpush.msra.mxu0 0.0
          %402 = vmatpush.msra.mxu0 0.0
          %403 = vmatpush.msra.mxu0 0.0
          %404 = vmatpush.msra.mxu0 0.0
          %405 = vmatpush.msra.mxu0 0.0
          %406 = vmatpush.msra.mxu0 %v367
          %407 = vmatmul.f32.gmra.mxu0 %v363
          %v408 = vpop.f32.mrf.mxu0
          %v409 = vadd.f32 %v334, %v408
          %410 = vdwg.mxu0
          %411 = vmatpush.msra.mxu0 0.0
          %412 = vmatpush.msra.mxu0 0.0
          %413 = vmatpush.msra.mxu0 0.0
          %414 = vmatpush.msra.mxu0 0.0
          %415 = vmatpush.msra.mxu0 0.0
          %416 = vmatpush.msra.mxu0 0.0
          %417 = vmatpush.msra.mxu0 0.0
          %418 = vmatpush.msra.mxu0 0.0
          %419 = vmatpush.msra.mxu0 0.0
          %420 = vmatpush.msra.mxu0 0.0
          %421 = vmatpush.msra.mxu0 0.0
          %422 = vmatpush.msra.mxu0 0.0
          %423 = vmatpush.msra.mxu0 0.0
          %424 = vmatpush.msra.mxu0 0.0
          %425 = vmatpush.msra.mxu0 0.0
          %426 = vmatpush.msra.mxu0 %v369
          %427 = vmatmul.f32.gmra.mxu0 %v363
          %v428 = vpop.f32.mrf.mxu0
          %v429 = vadd.f32 %v354, %v428
          %430 = vdwg.mxu0
          %s431 = scalar_lea.vmem %s1, 16
          %v432 = vld [vmem:[%s431] sm:$0xff]
          %433 = vst [vmem:[#allocation1] ss:$2 sm:$0xff] %v263
          %s434 = scalar_lea.vmem [#allocation1], 16
          %435 = vst [vmem:[%s434] ss:$2 sm:$0xff] %v264
          %v436 = vld.sshfl [vmem:[#allocation1] sm:$0xff pattern:$0x75316420]
          %v437 = vld.sshfl [vmem:[#allocation1 + $0x8] sm:$0xff pattern:$0x75316420]
          %v438 = vld.sshfl [vmem:[#allocation1 + $0x10] sm:$0xff pattern:$0x75316420]
          %439 = vrot.lane.b32.xlu0 %v436, 126
          %v440 = vpop.permute.xlu0 %439
          %441 = vrot.lane.b32.xlu0 %v437, 126
          %v442 = vpop.permute.xlu0 %441
          %443 = vrot.lane.b32.xlu0 %v438, 126
          %v444 = vpop.permute.xlu0 %443
          %vm445 = vcmask 1031168
          %v446 = vsel %vm445, %v440, %v442
          %v447 = vsel %vm445, %v442, %v444
          %v449 = vsel %vm285, %v432, 0
          %v451 = vsel %vm289, %v446, 0
          %v453 = vsel %vm289, %v447, 0
          %v455 = vsel %vm289, %v444, 0
          %457 = vmatpush.msra.mxu0 0.0
          %458 = vmatpush.msra.mxu0 0.0
          %459 = vmatpush.msra.mxu0 0.0
          %460 = vmatpush.msra.mxu0 0.0
          %461 = vmatpush.msra.mxu0 0.0
          %462 = vmatpush.msra.mxu0 0.0
          %463 = vmatpush.msra.mxu0 0.0
          %464 = vmatpush.msra.mxu0 0.0
          %465 = vmatpush.msra.mxu0 0.0
          %466 = vmatpush.msra.mxu0 0.0
          %467 = vmatpush.msra.mxu0 0.0
          %468 = vmatpush.msra.mxu0 0.0
          %469 = vmatpush.msra.mxu0 0.0
          %470 = vmatpush.msra.mxu0 0.0
          %471 = vmatpush.msra.mxu0 0.0
          %472 = vmatpush.msra.mxu0 %v451
          %473 = vmatmul.f32.gmra.mxu0 %v449
          %v474 = vpop.f32.mrf.mxu0
          %v475 = vadd.f32 0.0, %v474
          %476 = vdwg.mxu0
          %477 = vmatpush.msra.mxu0 0.0
          %478 = vmatpush.msra.mxu0 0.0
          %479 = vmatpush.msra.mxu0 0.0
          %480 = vmatpush.msra.mxu0 0.0
          %481 = vmatpush.msra.mxu0 0.0
          %482 = vmatpush.msra.mxu0 0.0
          %483 = vmatpush.msra.mxu0 0.0
          %484 = vmatpush.msra.mxu0 0.0
          %485 = vmatpush.msra.mxu0 0.0
          %486 = vmatpush.msra.mxu0 0.0
          %487 = vmatpush.msra.mxu0 0.0
          %488 = vmatpush.msra.mxu0 0.0
          %489 = vmatpush.msra.mxu0 0.0
          %490 = vmatpush.msra.mxu0 0.0
          %491 = vmatpush.msra.mxu0 0.0
          %492 = vmatpush.msra.mxu0 %v453
          %493 = vmatmul.f32.gmra.mxu0 %v449
          %v494 = vpop.f32.mrf.mxu0
          %v495 = vadd.f32 0.0, %v494
          %496 = vdwg.mxu0
          %497 = vmatpush.msra.mxu0 0.0
          %498 = vmatpush.msra.mxu0 0.0
          %499 = vmatpush.msra.mxu0 0.0
          %500 = vmatpush.msra.mxu0 0.0
          %501 = vmatpush.msra.mxu0 0.0
          %502 = vmatpush.msra.mxu0 0.0
          %503 = vmatpush.msra.mxu0 0.0
          %504 = vmatpush.msra.mxu0 0.0
          %505 = vmatpush.msra.mxu0 0.0
          %506 = vmatpush.msra.mxu0 0.0
          %507 = vmatpush.msra.mxu0 0.0
          %508 = vmatpush.msra.mxu0 0.0
          %509 = vmatpush.msra.mxu0 0.0
          %510 = vmatpush.msra.mxu0 0.0
          %511 = vmatpush.msra.mxu0 0.0
          %512 = vmatpush.msra.mxu0 %v455
          %513 = vmatmul.f32.gmra.mxu0 %v449
          %v514 = vpop.f32.mrf.mxu0
          %v515 = vadd.f32 0.0, %v514
          %516 = vdwg.mxu0
          %v517 = vadd.f32 %v389, %v475
          %v518 = vadd.f32 %v409, %v495
          %v519 = vadd.f32 %v429, %v515
          %s520 = scalar_lea.vmem %s1, 24
          %v521 = vld [vmem:[%s520] sm:$0xff]
          %522 = vst [vmem:[#allocation1] ss:$2 sm:$0xff] %v263
          %s523 = scalar_lea.vmem [#allocation1], 16
          %524 = vst [vmem:[%s523] ss:$2 sm:$0xff] %v264
          %v525 = vld.sshfl [vmem:[#allocation1] sm:$0xff pattern:$0x75316420]
          %v526 = vld.sshfl [vmem:[#allocation1 + $0x8] sm:$0xff pattern:$0x75316420]
          %v527 = vld.sshfl [vmem:[#allocation1 + $0x10] sm:$0xff pattern:$0x75316420]
          %528 = vrot.lane.b32.xlu0 %v525, 110
          %v529 = vpop.permute.xlu0 %528
          %530 = vrot.lane.b32.xlu0 %v526, 110
          %v531 = vpop.permute.xlu0 %530
          %532 = vrot.lane.b32.xlu0 %v527, 110
          %v533 = vpop.permute.xlu0 %532
          %vm534 = vcmask 900096
          %v535 = vsel %vm534, %v529, %v531
          %v536 = vsel %vm534, %v531, %v533
          %v538 = vsel %vm285, %v521, 0
          %v540 = vsel %vm289, %v535, 0
          %v542 = vsel %vm289, %v536, 0
          %v544 = vsel %vm289, %v533, 0
          %546 = vmatpush.msra.mxu0 0.0
          %547 = vmatpush.msra.mxu0 0.0
          %548 = vmatpush.msra.mxu0 0.0
          %549 = vmatpush.msra.mxu0 0.0
          %550 = vmatpush.msra.mxu0 0.0
          %551 = vmatpush.msra.mxu0 0.0
          %552 = vmatpush.msra.mxu0 0.0
          %553 = vmatpush.msra.mxu0 0.0
          %554 = vmatpush.msra.mxu0 0.0
          %555 = vmatpush.msra.mxu0 0.0
          %556 = vmatpush.msra.mxu0 0.0
          %557 = vmatpush.msra.mxu0 0.0
          %558 = vmatpush.msra.mxu0 0.0
          %559 = vmatpush.msra.mxu0 0.0
          %560 = vmatpush.msra.mxu0 0.0
          %561 = vmatpush.msra.mxu0 %v540
          %562 = vmatmul.f32.gmra.mxu0 %v538
          %v563 = vpop.f32.mrf.mxu0
          %v564 = vadd.f32 0.0, %v563
          %565 = vdwg.mxu0
          %566 = vmatpush.msra.mxu0 0.0
          %567 = vmatpush.msra.mxu0 0.0
          %568 = vmatpush.msra.mxu0 0.0
          %569 = vmatpush.msra.mxu0 0.0
          %570 = vmatpush.msra.mxu0 0.0
          %571 = vmatpush.msra.mxu0 0.0
          %572 = vmatpush.msra.mxu0 0.0
          %573 = vmatpush.msra.mxu0 0.0
          %574 = vmatpush.msra.mxu0 0.0
          %575 = vmatpush.msra.mxu0 0.0
          %576 = vmatpush.msra.mxu0 0.0
          %577 = vmatpush.msra.mxu0 0.0
          %578 = vmatpush.msra.mxu0 0.0
          %579 = vmatpush.msra.mxu0 0.0
          %580 = vmatpush.msra.mxu0 0.0
          %581 = vmatpush.msra.mxu0 %v542
          %582 = vmatmul.f32.gmra.mxu0 %v538
          %v583 = vpop.f32.mrf.mxu0
          %v584 = vadd.f32 0.0, %v583
          %585 = vdwg.mxu0
          %586 = vmatpush.msra.mxu0 0.0
          %587 = vmatpush.msra.mxu0 0.0
          %588 = vmatpush.msra.mxu0 0.0
          %589 = vmatpush.msra.mxu0 0.0
          %590 = vmatpush.msra.mxu0 0.0
          %591 = vmatpush.msra.mxu0 0.0
          %592 = vmatpush.msra.mxu0 0.0
          %593 = vmatpush.msra.mxu0 0.0
          %594 = vmatpush.msra.mxu0 0.0
          %595 = vmatpush.msra.mxu0 0.0
          %596 = vmatpush.msra.mxu0 0.0
          %597 = vmatpush.msra.mxu0 0.0
          %598 = vmatpush.msra.mxu0 0.0
          %599 = vmatpush.msra.mxu0 0.0
          %600 = vmatpush.msra.mxu0 0.0
          %601 = vmatpush.msra.mxu0 %v544
          %602 = vmatmul.f32.gmra.mxu0 %v538
          %v603 = vpop.f32.mrf.mxu0
          %v604 = vadd.f32 0.0, %v603
          %605 = vdwg.mxu0
          %v606 = vadd.f32 %v517, %v564
          %v607 = vadd.f32 %v518, %v584
          %v608 = vadd.f32 %v519, %v604
          %s609 = scalar_lea.vmem %s1, 32
          %v610 = vld [vmem:[%s609] sm:$0xff]
          %611 = vst [vmem:[#allocation1] ss:$2 sm:$0xff] %v263
          %s612 = scalar_lea.vmem [#allocation1], 16
          %613 = vst [vmem:[%s612] ss:$2 sm:$0xff] %v264
          %v614 = vld.sshfl [vmem:[#allocation1] sm:$0xff pattern:$0x75316420]
          %v615 = vld.sshfl [vmem:[#allocation1 + $0x8] sm:$0xff pattern:$0x75316420]
          %v616 = vld.sshfl [vmem:[#allocation1 + $0x10] sm:$0xff pattern:$0x75316420]
          %617 = vrot.lane.b32.xlu0 %v614, 109
          %v618 = vpop.permute.xlu0 %617
          %619 = vrot.lane.b32.xlu0 %v615, 109
          %v620 = vpop.permute.xlu0 %619
          %621 = vrot.lane.b32.xlu0 %v616, 109
          %v622 = vpop.permute.xlu0 %621
          %vm623 = vcmask 891904
          %v624 = vsel %vm623, %v618, %v620
          %v625 = vsel %vm623, %v620, %v622
          %v627 = vsel %vm285, %v610, 0
          %v629 = vsel %vm289, %v624, 0
          %v631 = vsel %vm289, %v625, 0
          %v633 = vsel %vm289, %v622, 0
          %635 = vmatpush.msra.mxu0 0.0
          %636 = vmatpush.msra.mxu0 0.0
          %637 = vmatpush.msra.mxu0 0.0
          %638 = vmatpush.msra.mxu0 0.0
          %639 = vmatpush.msra.mxu0 0.0
          %640 = vmatpush.msra.mxu0 0.0
          %641 = vmatpush.msra.mxu0 0.0
          %642 = vmatpush.msra.mxu0 0.0
          %643 = vmatpush.msra.mxu0 0.0
          %644 = vmatpush.msra.mxu0 0.0
          %645 = vmatpush.msra.mxu0 0.0
          %646 = vmatpush.msra.mxu0 0.0
          %647 = vmatpush.msra.mxu0 0.0
          %648 = vmatpush.msra.mxu0 0.0
          %649 = vmatpush.msra.mxu0 0.0
          %650 = vmatpush.msra.mxu0 %v629
          %651 = vmatmul.f32.gmra.mxu0 %v627
          %v652 = vpop.f32.mrf.mxu0
          %v653 = vadd.f32 0.0, %v652
          %654 = vdwg.mxu0
          %655 = vmatpush.msra.mxu0 0.0
          %656 = vmatpush.msra.mxu0 0.0
          %657 = vmatpush.msra.mxu0 0.0
          %658 = vmatpush.msra.mxu0 0.0
          %659 = vmatpush.msra.mxu0 0.0
          %660 = vmatpush.msra.mxu0 0.0
          %661 = vmatpush.msra.mxu0 0.0
          %662 = vmatpush.msra.mxu0 0.0
          %663 = vmatpush.msra.mxu0 0.0
          %664 = vmatpush.msra.mxu0 0.0
          %665 = vmatpush.msra.mxu0 0.0
          %666 = vmatpush.msra.mxu0 0.0
          %667 = vmatpush.msra.mxu0 0.0
          %668 = vmatpush.msra.mxu0 0.0
          %669 = vmatpush.msra.mxu0 0.0
          %670 = vmatpush.msra.mxu0 %v631
          %671 = vmatmul.f32.gmra.mxu0 %v627
          %v672 = vpop.f32.mrf.mxu0
          %v673 = vadd.f32 0.0, %v672
          %674 = vdwg.mxu0
          %675 = vmatpush.msra.mxu0 0.0
          %676 = vmatpush.msra.mxu0 0.0
          %677 = vmatpush.msra.mxu0 0.0
          %678 = vmatpush.msra.mxu0 0.0
          %679 = vmatpush.msra.mxu0 0.0
          %680 = vmatpush.msra.mxu0 0.0
          %681 = vmatpush.msra.mxu0 0.0
          %682 = vmatpush.msra.mxu0 0.0
          %683 = vmatpush.msra.mxu0 0.0
          %684 = vmatpush.msra.mxu0 0.0
          %685 = vmatpush.msra.mxu0 0.0
          %686 = vmatpush.msra.mxu0 0.0
          %687 = vmatpush.msra.mxu0 0.0
          %688 = vmatpush.msra.mxu0 0.0
          %689 = vmatpush.msra.mxu0 0.0
          %690 = vmatpush.msra.mxu0 %v633
          %691 = vmatmul.f32.gmra.mxu0 %v627
          %v692 = vpop.f32.mrf.mxu0
          %v693 = vadd.f32 0.0, %v692
          %694 = vdwg.mxu0
          %v695 = vadd.f32 %v606, %v653
          %v696 = vadd.f32 %v607, %v673
          %v697 = vadd.f32 %v608, %v693
          %s698 = scalar_lea.vmem %s1, 40
          %v699 = vld [vmem:[%s698] sm:$0xff]
          %700 = vst [vmem:[#allocation1] ss:$2 sm:$0xff] %v263
          %s701 = scalar_lea.vmem [#allocation1], 16
          %702 = vst [vmem:[%s701] ss:$2 sm:$0xff] %v264
          %v703 = vld.sshfl [vmem:[#allocation1] sm:$0xff pattern:$0x75316420]
          %v704 = vld.sshfl [vmem:[#allocation1 + $0x8] sm:$0xff pattern:$0x75316420]
          %v705 = vld.sshfl [vmem:[#allocation1 + $0x10] sm:$0xff pattern:$0x75316420]
          %706 = vrot.lane.b32.xlu0 %v703, 108
          %v707 = vpop.permute.xlu0 %706
          %708 = vrot.lane.b32.xlu0 %v704, 108
          %v709 = vpop.permute.xlu0 %708
          %710 = vrot.lane.b32.xlu0 %v705, 108
          %v711 = vpop.permute.xlu0 %710
          %vm712 = vcmask 883712
          %v713 = vsel %vm712, %v707, %v709
          %v714 = vsel %vm712, %v709, %v711
          %v716 = vsel %vm285, %v699, 0
          %v718 = vsel %vm289, %v713, 0
          %v720 = vsel %vm289, %v714, 0
          %v722 = vsel %vm289, %v711, 0
          %724 = vmatpush.msra.mxu0 0.0
          %725 = vmatpush.msra.mxu0 0.0
          %726 = vmatpush.msra.mxu0 0.0
          %727 = vmatpush.msra.mxu0 0.0
          %728 = vmatpush.msra.mxu0 0.0
          %729 = vmatpush.msra.mxu0 0.0
          %730 = vmatpush.msra.mxu0 0.0
          %731 = vmatpush.msra.mxu0 0.0
          %732 = vmatpush.msra.mxu0 0.0
          %733 = vmatpush.msra.mxu0 0.0
          %734 = vmatpush.msra.mxu0 0.0
          %735 = vmatpush.msra.mxu0 0.0
          %736 = vmatpush.msra.mxu0 0.0
          %737 = vmatpush.msra.mxu0 0.0
          %738 = vmatpush.msra.mxu0 0.0
          %739 = vmatpush.msra.mxu0 %v718
          %740 = vmatmul.f32.gmra.mxu0 %v716
          %v741 = vpop.f32.mrf.mxu0
          %v742 = vadd.f32 0.0, %v741
          %743 = vdwg.mxu0
          %744 = vmatpush.msra.mxu0 0.0
          %745 = vmatpush.msra.mxu0 0.0
          %746 = vmatpush.msra.mxu0 0.0
          %747 = vmatpush.msra.mxu0 0.0
          %748 = vmatpush.msra.mxu0 0.0
          %749 = vmatpush.msra.mxu0 0.0
          %750 = vmatpush.msra.mxu0 0.0
          %751 = vmatpush.msra.mxu0 0.0
          %752 = vmatpush.msra.mxu0 0.0
          %753 = vmatpush.msra.mxu0 0.0
          %754 = vmatpush.msra.mxu0 0.0
          %755 = vmatpush.msra.mxu0 0.0
          %756 = vmatpush.msra.mxu0 0.0
          %757 = vmatpush.msra.mxu0 0.0
          %758 = vmatpush.msra.mxu0 0.0
          %759 = vmatpush.msra.mxu0 %v720
          %760 = vmatmul.f32.gmra.mxu0 %v716
          %v761 = vpop.f32.mrf.mxu0
          %v762 = vadd.f32 0.0, %v761
          %763 = vdwg.mxu0
          %764 = vmatpush.msra.mxu0 0.0
          %765 = vmatpush.msra.mxu0 0.0
          %766 = vmatpush.msra.mxu0 0.0
          %767 = vmatpush.msra.mxu0 0.0
          %768 = vmatpush.msra.mxu0 0.0
          %769 = vmatpush.msra.mxu0 0.0
          %770 = vmatpush.msra.mxu0 0.0
          %771 = vmatpush.msra.mxu0 0.0
          %772 = vmatpush.msra.mxu0 0.0
          %773 = vmatpush.msra.mxu0 0.0
          %774 = vmatpush.msra.mxu0 0.0
          %775 = vmatpush.msra.mxu0 0.0
          %776 = vmatpush.msra.mxu0 0.0
          %777 = vmatpush.msra.mxu0 0.0
          %778 = vmatpush.msra.mxu0 0.0
          %779 = vmatpush.msra.mxu0 %v722
          %780 = vmatmul.f32.gmra.mxu0 %v716
          %v781 = vpop.f32.mrf.mxu0
          %v782 = vadd.f32 0.0, %v781
          %783 = vdwg.mxu0
          %v784 = vadd.f32 %v695, %v742
          %v785 = vadd.f32 %v696, %v762
          %v786 = vadd.f32 %v697, %v782
          %s787 = scalar_lea.vmem %s1, 48
          %v788 = vld [vmem:[%s787] sm:$0xff]
          %789 = vst [vmem:[#allocation1] ss:$2 sm:$0xff] %v263
          %s790 = scalar_lea.vmem [#allocation1], 16
          %791 = vst [vmem:[%s790] ss:$2 sm:$0xff] %v264
          %v792 = vld.sshfl [vmem:[#allocation1] sm:$0xff pattern:$0x75316420]
          %v793 = vld.sshfl [vmem:[#allocation1 + $0x8] sm:$0xff pattern:$0x75316420]
          %v794 = vld.sshfl [vmem:[#allocation1 + $0x10] sm:$0xff pattern:$0x75316420]
          %795 = vrot.lane.b32.xlu0 %v792, 92
          %v796 = vpop.permute.xlu0 %795
          %797 = vrot.lane.b32.xlu0 %v793, 92
          %v798 = vpop.permute.xlu0 %797
          %799 = vrot.lane.b32.xlu0 %v794, 92
          %v800 = vpop.permute.xlu0 %799
          %vm801 = vcmask 752640
          %v802 = vsel %vm801, %v796, %v798
          %v803 = vsel %vm801, %v798, %v800
          %v805 = vsel %vm285, %v788, 0
          %v807 = vsel %vm289, %v802, 0
          %v809 = vsel %vm289, %v803, 0
          %v811 = vsel %vm289, %v800, 0
          %813 = vmatpush.msra.mxu0 0.0
          %814 = vmatpush.msra.mxu0 0.0
          %815 = vmatpush.msra.mxu0 0.0
          %816 = vmatpush.msra.mxu0 0.0
          %817 = vmatpush.msra.mxu0 0.0
          %818 = vmatpush.msra.mxu0 0.0
          %819 = vmatpush.msra.mxu0 0.0
          %820 = vmatpush.msra.mxu0 0.0
          %821 = vmatpush.msra.mxu0 0.0
          %822 = vmatpush.msra.mxu0 0.0
          %823 = vmatpush.msra.mxu0 0.0
          %824 = vmatpush.msra.mxu0 0.0
          %825 = vmatpush.msra.mxu0 0.0
          %826 = vmatpush.msra.mxu0 0.0
          %827 = vmatpush.msra.mxu0 0.0
          %828 = vmatpush.msra.mxu0 %v807
          %829 = vmatmul.f32.gmra.mxu0 %v805
          %v830 = vpop.f32.mrf.mxu0
          %v831 = vadd.f32 0.0, %v830
          %832 = vdwg.mxu0
          %833 = vmatpush.msra.mxu0 0.0
          %834 = vmatpush.msra.mxu0 0.0
          %835 = vmatpush.msra.mxu0 0.0
          %836 = vmatpush.msra.mxu0 0.0
          %837 = vmatpush.msra.mxu0 0.0
          %838 = vmatpush.msra.mxu0 0.0
          %839 = vmatpush.msra.mxu0 0.0
          %840 = vmatpush.msra.mxu0 0.0
          %841 = vmatpush.msra.mxu0 0.0
          %842 = vmatpush.msra.mxu0 0.0
          %843 = vmatpush.msra.mxu0 0.0
          %844 = vmatpush.msra.mxu0 0.0
          %845 = vmatpush.msra.mxu0 0.0
          %846 = vmatpush.msra.mxu0 0.0
          %847 = vmatpush.msra.mxu0 0.0
          %848 = vmatpush.msra.mxu0 %v809
          %849 = vmatmul.f32.gmra.mxu0 %v805
          %v850 = vpop.f32.mrf.mxu0
          %v851 = vadd.f32 0.0, %v850
          %852 = vdwg.mxu0
          %853 = vmatpush.msra.mxu0 0.0
          %854 = vmatpush.msra.mxu0 0.0
          %855 = vmatpush.msra.mxu0 0.0
          %856 = vmatpush.msra.mxu0 0.0
          %857 = vmatpush.msra.mxu0 0.0
          %858 = vmatpush.msra.mxu0 0.0
          %859 = vmatpush.msra.mxu0 0.0
          %860 = vmatpush.msra.mxu0 0.0
          %861 = vmatpush.msra.mxu0 0.0
          %862 = vmatpush.msra.mxu0 0.0
          %863 = vmatpush.msra.mxu0 0.0
          %864 = vmatpush.msra.mxu0 0.0
          %865 = vmatpush.msra.mxu0 0.0
          %866 = vmatpush.msra.mxu0 0.0
          %867 = vmatpush.msra.mxu0 0.0
          %868 = vmatpush.msra.mxu0 %v811
          %869 = vmatmul.f32.gmra.mxu0 %v805
          %v870 = vpop.f32.mrf.mxu0
          %v871 = vadd.f32 0.0, %v870
          %872 = vdwg.mxu0
          %v873 = vadd.f32 %v784, %v831
          %v874 = vadd.f32 %v785, %v851
          %v875 = vadd.f32 %v786, %v871
          %s876 = scalar_lea.vmem %s1, 56
          %v877 = vld [vmem:[%s876] sm:$0xff]
          %878 = vst [vmem:[#allocation1] ss:$2 sm:$0xff] %v263
          %s879 = scalar_lea.vmem [#allocation1], 16
          %880 = vst [vmem:[%s879] ss:$2 sm:$0xff] %v264
          %v881 = vld.sshfl [vmem:[#allocation1] sm:$0xff pattern:$0x75316420]
          %v882 = vld.sshfl [vmem:[#allocation1 + $0x8] sm:$0xff pattern:$0x75316420]
          %v883 = vld.sshfl [vmem:[#allocation1 + $0x10] sm:$0xff pattern:$0x75316420]
          %884 = vrot.lane.b32.xlu0 %v881, 91
          %v885 = vpop.permute.xlu0 %884
          %886 = vrot.lane.b32.xlu0 %v882, 91
          %v887 = vpop.permute.xlu0 %886
          %888 = vrot.lane.b32.xlu0 %v883, 91
          %v889 = vpop.permute.xlu0 %888
          %vm890 = vcmask 744448
          %v891 = vsel %vm890, %v885, %v887
          %v892 = vsel %vm890, %v887, %v889
          %v894 = vsel %vm285, %v877, 0
          %v896 = vsel %vm289, %v891, 0
          %v898 = vsel %vm289, %v892, 0
          %v900 = vsel %vm289, %v889, 0
          %902 = vmatpush.msra.mxu0 0.0
          %903 = vmatpush.msra.mxu0 0.0
          %904 = vmatpush.msra.mxu0 0.0
          %905 = vmatpush.msra.mxu0 0.0
          %906 = vmatpush.msra.mxu0 0.0
          %907 = vmatpush.msra.mxu0 0.0
          %908 = vmatpush.msra.mxu0 0.0
          %909 = vmatpush.msra.mxu0 0.0
          %910 = vmatpush.msra.mxu0 0.0
          %911 = vmatpush.msra.mxu0 0.0
          %912 = vmatpush.msra.mxu0 0.0
          %913 = vmatpush.msra.mxu0 0.0
          %914 = vmatpush.msra.mxu0 0.0
          %915 = vmatpush.msra.mxu0 0.0
          %916 = vmatpush.msra.mxu0 0.0
          %917 = vmatpush.msra.mxu0 %v896
          %918 = vmatmul.f32.gmra.mxu0 %v894
          %v919 = vpop.f32.mrf.mxu0
          %v920 = vadd.f32 0.0, %v919
          %921 = vdwg.mxu0
          %922 = vmatpush.msra.mxu0 0.0
          %923 = vmatpush.msra.mxu0 0.0
          %924 = vmatpush.msra.mxu0 0.0
          %925 = vmatpush.msra.mxu0 0.0
          %926 = vmatpush.msra.mxu0 0.0
          %927 = vmatpush.msra.mxu0 0.0
          %928 = vmatpush.msra.mxu0 0.0
          %929 = vmatpush.msra.mxu0 0.0
          %930 = vmatpush.msra.mxu0 0.0
          %931 = vmatpush.msra.mxu0 0.0
          %932 = vmatpush.msra.mxu0 0.0
          %933 = vmatpush.msra.mxu0 0.0
          %934 = vmatpush.msra.mxu0 0.0
          %935 = vmatpush.msra.mxu0 0.0
          %936 = vmatpush.msra.mxu0 0.0
          %937 = vmatpush.msra.mxu0 %v898
          %938 = vmatmul.f32.gmra.mxu0 %v894
          %v939 = vpop.f32.mrf.mxu0
          %v940 = vadd.f32 0.0, %v939
          %941 = vdwg.mxu0
          %942 = vmatpush.msra.mxu0 0.0
          %943 = vmatpush.msra.mxu0 0.0
          %944 = vmatpush.msra.mxu0 0.0
          %945 = vmatpush.msra.mxu0 0.0
          %946 = vmatpush.msra.mxu0 0.0
          %947 = vmatpush.msra.mxu0 0.0
          %948 = vmatpush.msra.mxu0 0.0
          %949 = vmatpush.msra.mxu0 0.0
          %950 = vmatpush.msra.mxu0 0.0
          %951 = vmatpush.msra.mxu0 0.0
          %952 = vmatpush.msra.mxu0 0.0
          %953 = vmatpush.msra.mxu0 0.0
          %954 = vmatpush.msra.mxu0 0.0
          %955 = vmatpush.msra.mxu0 0.0
          %956 = vmatpush.msra.mxu0 0.0
          %957 = vmatpush.msra.mxu0 %v900
          %958 = vmatmul.f32.gmra.mxu0 %v894
          %v959 = vpop.f32.mrf.mxu0
          %v960 = vadd.f32 0.0, %v959
          %961 = vdwg.mxu0
          %v962 = vadd.f32 %v873, %v920
          %v963 = vadd.f32 %v874, %v940
          %v964 = vadd.f32 %v875, %v960
          %s965 = scalar_lea.vmem %s1, 64
          %v966 = vld [vmem:[%s965] sm:$0xff]
          %967 = vst [vmem:[#allocation1] ss:$2 sm:$0xff] %v263
          %s968 = scalar_lea.vmem [#allocation1], 16
          %969 = vst [vmem:[%s968] ss:$2 sm:$0xff] %v264
          %v970 = vld.sshfl [vmem:[#allocation1] sm:$0xff pattern:$0x75316420]
          %v971 = vld.sshfl [vmem:[#allocation1 + $0x8] sm:$0xff pattern:$0x75316420]
          %v972 = vld.sshfl [vmem:[#allocation1 + $0x10] sm:$0xff pattern:$0x75316420]
          %973 = vrot.lane.b32.xlu0 %v970, 90
          %v974 = vpop.permute.xlu0 %973
          %975 = vrot.lane.b32.xlu0 %v971, 90
          %v976 = vpop.permute.xlu0 %975
          %977 = vrot.lane.b32.xlu0 %v972, 90
          %v978 = vpop.permute.xlu0 %977
          %vm979 = vcmask 736256
          %v980 = vsel %vm979, %v974, %v976
          %v981 = vsel %vm979, %v976, %v978
          %v983 = vsel %vm285, %v966, 0
          %v985 = vsel %vm289, %v980, 0
          %v987 = vsel %vm289, %v981, 0
          %v989 = vsel %vm289, %v978, 0
          %991 = vmatpush.msra.mxu0 0.0
          %992 = vmatpush.msra.mxu0 0.0
          %993 = vmatpush.msra.mxu0 0.0
          %994 = vmatpush.msra.mxu0 0.0
          %995 = vmatpush.msra.mxu0 0.0
          %996 = vmatpush.msra.mxu0 0.0
          %997 = vmatpush.msra.mxu0 0.0
          %998 = vmatpush.msra.mxu0 0.0
          %999 = vmatpush.msra.mxu0 0.0
          %1000 = vmatpush.msra.mxu0 0.0
          %1001 = vmatpush.msra.mxu0 0.0
          %1002 = vmatpush.msra.mxu0 0.0
          %1003 = vmatpush.msra.mxu0 0.0
          %1004 = vmatpush.msra.mxu0 0.0
          %1005 = vmatpush.msra.mxu0 0.0
          %1006 = vmatpush.msra.mxu0 %v985
          %1007 = vmatmul.f32.gmra.mxu0 %v983
          %v1008 = vpop.f32.mrf.mxu0
          %v1009 = vadd.f32 0.0, %v1008
          %1010 = vdwg.mxu0
          %1011 = vmatpush.msra.mxu0 0.0
          %1012 = vmatpush.msra.mxu0 0.0
          %1013 = vmatpush.msra.mxu0 0.0
          %1014 = vmatpush.msra.mxu0 0.0
          %1015 = vmatpush.msra.mxu0 0.0
          %1016 = vmatpush.msra.mxu0 0.0
          %1017 = vmatpush.msra.mxu0 0.0
          %1018 = vmatpush.msra.mxu0 0.0
          %1019 = vmatpush.msra.mxu0 0.0
          %1020 = vmatpush.msra.mxu0 0.0
          %1021 = vmatpush.msra.mxu0 0.0
          %1022 = vmatpush.msra.mxu0 0.0
          %1023 = vmatpush.msra.mxu0 0.0
          %1024 = vmatpush.msra.mxu0 0.0
          %1025 = vmatpush.msra.mxu0 0.0
          %1026 = vmatpush.msra.mxu0 %v987
          %1027 = vmatmul.f32.gmra.mxu0 %v983
          %v1028 = vpop.f32.mrf.mxu0
          %v1029 = vadd.f32 0.0, %v1028
          %1030 = vdwg.mxu0
          %1031 = vmatpush.msra.mxu0 0.0
          %1032 = vmatpush.msra.mxu0 0.0
          %1033 = vmatpush.msra.mxu0 0.0
          %1034 = vmatpush.msra.mxu0 0.0
          %1035 = vmatpush.msra.mxu0 0.0
          %1036 = vmatpush.msra.mxu0 0.0
          %1037 = vmatpush.msra.mxu0 0.0
          %1038 = vmatpush.msra.mxu0 0.0
          %1039 = vmatpush.msra.mxu0 0.0
          %1040 = vmatpush.msra.mxu0 0.0
          %1041 = vmatpush.msra.mxu0 0.0
          %1042 = vmatpush.msra.mxu0 0.0
          %1043 = vmatpush.msra.mxu0 0.0
          %1044 = vmatpush.msra.mxu0 0.0
          %1045 = vmatpush.msra.mxu0 0.0
          %1046 = vmatpush.msra.mxu0 %v989
          %1047 = vmatmul.f32.gmra.mxu0 %v983
          %v1048 = vpop.f32.mrf.mxu0
          %v1049 = vadd.f32 0.0, %v1048
          %1050 = vdwg.mxu0
          %v1051 = vadd.f32 %v962, %v1009
          %v1052 = vadd.f32 %v963, %v1029
          %v1053 = vadd.f32 %v964, %v1049
          %v1054 = vld [vmem:[%s2] sm:$0x7]
          %v1056 = vperm.slane %v1054, 0
          %v1057 = vperm.slane %v1054, 1
          %v1058 = vperm.slane %v1054, 2
          %v1062 = vmul.f32 %v1051, %v1056
          %v1063 = vmul.f32 %v1052, %v1057
          %v1064 = vmul.f32 %v1053, %v1058
          %s1065 = smul.u32 %s24, 3
          %s1066 = smul.addr %s1065, 8
          %s1067 = scalar_lea.vmem [#allocation2], %s1066
          %1068 = vst [vmem:[%s1067] sm:$0xff] %v1062
          %1069 = vst [vmem:[%s1067 + $0x8] sm:$0xff] %v1063
          %vm1070 = vcmask 261120
          %1071 = vst.msk [vmem:[%s1067 + $0x10] sm:$0xff] %vm1070, %v1064
          %v1072 = vmul.f32 %v1062, %v1062
          %v1073 = vmul.f32 %v1063, %v1063
          %v1074 = vmul.f32 %v1064, %v1064
          %v1075 = vld [vmem:[#allocation3] sm:$0xff]
          %v1076 = vld [vmem:[#allocation3 + $0x8] sm:$0xff]
          %v1077 = vadd.f32 %v1062, %v1063
          %v1078 = vsel %vm1070, %v1064, 0.0
          %v1079 = vadd.f32 %v1077, %v1078
          %1080 = vadd.xlane.f32.xlu0 %v1079
          %v1081 = vpop.xlane.xlu0 %1080
          %v1082 = vadd.f32 %v1072, %v1073
          %v1083 = vsel %vm1070, %v1074, 0.0
          %v1084 = vadd.f32 %v1082, %v1083
          %1085 = vadd.xlane.f32.xlu0 %v1084
          %v1086 = vpop.xlane.xlu0 %1085
          %v1087 = vadd.f32 %v1075, %v1081
          %v1088 = vadd.f32 %v1076, %v1086
          %vm1089 = vcmask 7168
          %1090 = vst.msk [vmem:[#allocation3] sm:$0xff] %vm1089, %v1087
          %1091 = vst.msk [vmem:[#allocation3 + $0x8] sm:$0xff] %vm1089, %v1088
        $region44: #{tpu_custom_call.1} parent=39 // pred_fallthru
          _
        %p1092 = scmp.eq.s32.totalorder %s23, 1
        // Predicated region
        $region49: #{tpu_custom_call.1} parent=39 // pred_check
          %p1093 = pneg %p1092
        $region50: #{tpu_custom_call.1} parent=39 // pred_check_branch
          %1095 = sbr.rel (%p1093) target = $region52
        $region51: #{tpu_custom_call.1} parent=39 // pred_region
          %p1096 = scmp.eq.s32.totalorder %s24, 0
          // Predicated region
          $region53: #{tpu_custom_call.1} parent=51 // pred_check
            %p1097 = pneg %p1096
          $region54: #{tpu_custom_call.1} parent=51 // pred_check_branch
            %1099 = sbr.rel (%p1097) target = $region56
          $region55: #{tpu_custom_call.1} parent=51 // pred_region
            %v1100 = vld [vmem:[#allocation3] sm:$0xff]
            %v1101 = vrcp.pop 512.0
            %v1102 = vmul.f32 512.0, %v1101
            %v1103 = vsub.f32 1.0, %v1102
            %v1104 = vmul.f32 %v1101, %v1103
            %v1105 = vadd.f32 %v1101, %v1104
            %vm1106 = vweird.f32 %v1101
            %v1107 = vsel %vm1106, %v1101, %v1105
            %v1108 = vmul.f32 %v1100, %v1107
            %v1109 = vld [vmem:[#allocation3 + $0x8] sm:$0xff]
            %v1110 = vmul.f32 %v1109, %v1107
            %v1111 = vmul.f32 %v1108, %v1108
            %v1112 = vsub.f32 %v1110, %v1111
            %v1113 = vld [vmem:[%s3] sm:$0xff]
            %v1114 = vadd.f32 %v1112, 1e-05
            %v1115 = vrsqrt.pop %v1114
            %v1116 = vmul.f32 %v1115, %v1114
            %v1117 = vmul.f32 %v1116, %v1115
            %v1118 = vmul.f32 0.5, %v1117
            %v1119 = vsub.f32 1.5, %v1118
            %v1120 = vmul.f32 %v1115, %v1119
            %vm1121 = vweird.f32 %v1114
            %vm1122 = vweird.f32 %v1115
            %vm1123 = vmor %vm1121, %vm1122
            %v1124 = vsel %vm1123, %v1115, %v1120
            %v1125 = vmul.f32 %v1113, %v1124
            %v1126 = vld [vmem:[%s4] sm:$0xff]
            %v1127 = vmul.f32 %v1108, %v1125
            %v1128 = vsub.f32 %v1126, %v1127
            %vm1129 = vcmask 7168
            %1130 = vst.msk [vmem:[#allocation4] sm:$0xff] %vm1129, %v1125
            %1131 = vst.msk [vmem:[#allocation4 + $0x8] sm:$0xff] %vm1129, %v1128
          $region56: #{tpu_custom_call.1} parent=51 // pred_fallthru
            _
          %s1132 = smul.u32 %s24, 3
          %s1133 = smul.addr %s1132, 8
          %s1134 = scalar_lea.vmem [#allocation2], %s1133
          %v1135 = vld [vmem:[%s1134] sm:$0xff]
          %v1136 = vld [vmem:[%s1134 + $0x8] sm:$0xff]
          %v1137 = vld [vmem:[%s1134 + $0x10] sm:$0xff]
          %v1138 = vld [vmem:[#allocation4] sm:$0xff]
          %v1139 = vld [vmem:[#allocation4 + $0x8] sm:$0xff]
          %1141 = vset.pattern.permute.xlu0 0
          %1142 = vperm.xlu0 %1141, %v1138
          %v1143 = vpop.permute.xlu0 %1142
          %v1145 = vmul.f32 %v1135, %v1143
          %v1146 = vmul.f32 %v1136, %v1143
          %v1147 = vmul.f32 %v1137, %v1143
          %1149 = vset.pattern.permute.xlu0 0
          %1150 = vperm.xlu0 %1149, %v1139
          %v1151 = vpop.permute.xlu0 %1150
          %v1153 = vadd.f32 %v1145, %v1151
          %v1154 = vadd.f32 %v1146, %v1151
          %v1155 = vadd.f32 %v1147, %v1151
          %v1156 = vmax.f32 %v1153, 0.0
          %v1157 = vmax.f32 %v1154, 0.0
          %v1158 = vmax.f32 %v1155, 0.0
          %1159 = vst [vmem:[%s241] sm:$0xff] %v1156
          %1160 = vst [vmem:[%s241 + $0x8] sm:$0xff] %v1157
          %vm1161 = vcmask 261120
          %1162 = vst.msk [vmem:[%s241 + $0x10] sm:$0xff] %vm1161, %v1158
        $region52: #{tpu_custom_call.1} parent=39 // pred_fallthru
          _
        %s1163 = sand.u32 %s155, 1
        %s1164 = scalar_lea.sflag [#allocation6], %s1163
        %s1165 = sand.u32 %s155, 1
        %s1166 = smul.addr %s1165, 24
        %s1167 = scalar_lea.vmem [#allocation5], %s1166
        // Predicated region
        $region57: #{tpu_custom_call.1} parent=39 // pred_check
          %p1168 = pneg %p165
        $region58: #{tpu_custom_call.1} parent=39 // pred_check_branch
          %1170 = sbr.rel (%p1168) target = $region60
        $region59: #{tpu_custom_call.1} parent=39 // pred_region
          %s1171 = smul.u32 %s23, %s24
          %1173 = vsyncadd %s1164, 0
          %s1174 = smul.addr %s1171, 3
          %s1175 = smul.addr %s1174, 8
          %s1176 = scalar_lea.hbm %s5, %s1175
          %s1178 = sshll.u32 %s1167, 4
          %s1179 = int_to_ptr.vmem [resolvable:$true] %s1178
          %s1180 = sshll.u32 %s1176, 4
          %s1181 = int_to_ptr.hbm [resolvable:$true] %s1180
          %1183 = dma.vmem_to_hbm [thread:$0]  %s1179, 384, %s1181, %s1164
        $region60: #{tpu_custom_call.1} parent=39 // pred_fallthru
          _
      $region40: #{tpu_custom_call.1} parent=5 // pred_fallthru
        _
      %p1184 = scmp.le.s32.totalorder 2, %s14
      // Predicated region
      $region61: #{tpu_custom_call.1} parent=5 // pred_check
        %p1185 = pneg %p1184
      $region62: #{tpu_custom_call.1} parent=5 // pred_check_branch
        %1187 = sbr.rel (%p1185) target = $region64
      $region63: #{tpu_custom_call.1} parent=5 // pred_region
        %s1188 = ssub.s32 %s14, 2
        // Predicated region
        $region65: #{tpu_custom_call.1} parent=63 // pred_check
          %p1189 = pneg %p171
        $region66: #{tpu_custom_call.1} parent=63 // pred_check_branch
          %1191 = sbr.rel (%p1189) target = $region68
        $region67: #{tpu_custom_call.1} parent=63 // pred_region
          %s1192 = sand.u32 %s156, 1
          %s1193 = scalar_lea.sflag [#allocation6], %s1192
          %s1194 = sand.u32 %s156, 1
          %s1195 = smul.addr %s1194, 24
          %s1196 = scalar_lea.vmem [#allocation5], %s1195
          %1198 = dma.done %s1193, 384
        $region68: #{tpu_custom_call.1} parent=63 // pred_fallthru
          _
      $region64: #{tpu_custom_call.1} parent=5 // pred_fallthru
        _
    $region6: #{tpu_custom_call.1} parent=1 // loop_footer
      %s18 = sadd.s32 1, %s14
    $region7: #{tpu_custom_call.1} parent=1 // loop_footer_branch
      %13 = sbr.rel target = $region3
    $region8: #{tpu_custom_call.1} parent=1 // loop_exit
      _
    %1199 = vsyncpa [#allocation6], 1
    %s1200 = scalar_lea.sflag [#allocation6], 1
    %1201 = vsyncpa %s1200, 1

</llo_original>
